<compile_context>
chip_gen: v7x
topology: tpu7x:2x2x1
jax: 0.10.0
libtpu: 0.0.40
codegen_flags: <defaults>
</compile_context>

<pallas_src>
import jax
import jax.numpy as jnp
from jax.experimental import pallas as pl
from jax.experimental.pallas import tpu as pltpu

B = 2                    # batch
C, H, W = 3, 16, 16
D_IMG = C * H * W        # 768 (matches ViT hidden size for the proxy encoder)
D = 768                  # encoder hidden size
D_OUT = 512              # decoder output size
SEQ = 8                  # text sequence length
VOCAB = 64               # toy vocab for the proxy text embedding


def _pick_tile_n():
    """Output-N tile: split across both TensorCores on v7x, one block otherwise.

    v5e/v6e have a single TensorCore, so a 2-point grid is just a serial loop
    that adds ~0.35 us/step to a ~1-2 us kernel -> use TN = D_OUT (grid=(1,)).
    v7x has 2 TCs/chip -> TN = D_OUT // 2 with "parallel" semantics so each
    core streams half the weight bytes concurrently.
    """
    try:
        kind = jax.devices()[0].device_kind.lower()
    except Exception:  # pragma: no cover - defensive, never expected on TPU
        kind = ""
    return D_OUT // 2 if "v7" in kind else D_OUT


def vlm_kernel(ids_ref, img_ref, w_img_ref, t_ref, b_ref, out_ref):
    """out[:, tile] = img@W_img_eff[:, tile] + T_eff[ids, tile] + b_eff[tile].

    ids_ref  : SMEM [B, SEQ] int32 (scalar prefetch) - only column 0 is used.
    img_ref  : VMEM [B, 768]  f32  (raw image, cast to bf16 here)
    w_img_ref: VMEM [768, TN] bf16 (folded image-path weights, tile of N)
    t_ref    : VMEM [VOCAB, TN] bf16 (folded text-path lookup table, tile of N)
    b_ref    : VMEM [1, TN]   f32  (folded bias, tile of N)
    """
    b = out_ref.shape[0]
    vocab = t_ref.shape[0]

    # Image path: in-kernel bf16 cast (f32 activation bytes are negligible).
    img = img_ref[...].astype(jnp.bfloat16)
    acc = jnp.dot(img, w_img_ref[...], preferred_element_type=jnp.float32)

    # Text path: gather the CLS-token rows of the folded table via a one-hot
    # matmul (tiny (B, VOCAB) @ (VOCAB, TN) on the otherwise idle MXU; avoids
    # any wrapper-side gather/materialization).
    row = jax.lax.broadcasted_iota(jnp.int32, (b, vocab), 0)
    col = jax.lax.broadcasted_iota(jnp.int32, (b, vocab), 1)
    sel = jnp.zeros((b, vocab), jnp.int32) + ids_ref[0, 0]
    for i in range(1, b):
        sel = jnp.where(row == i, ids_ref[i, 0], sel)
    onehot = (col == sel).astype(jnp.bfloat16)
    acc = acc + jnp.dot(onehot, t_ref[...], preferred_element_type=jnp.float32)

    out_ref[...] = (acc + b_ref[...]).astype(out_ref.dtype)


def fuse_params(p):
    """One-time offline fold of the all-affine chain.

    Returns:
      w_img_eff: [768, 512] bf16  (image path:  wv @ w1_img @ w2)
      t_eff    : [VOCAB, 512] bf16 (text path:  emb @ wt @ w1_txt @ w2)
      b_eff    : [1, 512] f32     ((bv@w1_img + bt@w1_txt + b1) @ w2 + b2)
    Exact (up to f32 reassociation / one final bf16 rounding) because every
    stage is affine; biases stay f32.
    """
    w1i_w2 = p["w1_img"] @ p["w2"]                               # [768, 512]
    w1t_w2 = p["w1_txt"] @ p["w2"]                               # [768, 512]
    w_img_eff = (p["wv"] @ w1i_w2).astype(jnp.bfloat16)          # [768, 512]
    t_eff = (p["emb"] @ p["wt"] @ w1t_w2).astype(jnp.bfloat16)   # [VOCAB, 512]
    b_eff = (p["bv"] @ w1i_w2 + p["bt"] @ w1t_w2
             + p["b1"] @ p["w2"] + p["b2"])                      # [1, 512] f32
    return w_img_eff, t_eff, b_eff


def vlm_forward(image_nchw, text_ids, fused):
    """image_nchw: [B,3,16,16] f32, text_ids: [B,SEQ] int32 -> [B,512] f32."""
    w_img, t_eff, b_eff = fused
    b = image_nchw.shape[0]

    # Contiguous NCHW flatten is a free bitcast in XLA (no HBM round trip);
    # the bf16 cast and the CLS-token gather are done inside the kernel.
    img = image_nchw.reshape(b, -1)                 # [B, 768] f32

    tn = _pick_tile_n()

    # Advisory cost so XLA schedules around this short, HBM-bound call.
    flops = 2 * b * D_IMG * D_OUT + 2 * b * VOCAB * D_OUT
    bytes_accessed = (w_img.size * 2                # bf16 folded image weights
                      + t_eff.size * 2              # bf16 folded text table
                      + b_eff.size * 4              # f32 bias
                      + img.size * 4                # f32 image activations
                      + text_ids.size * 4           # int32 token ids (SMEM)
                      + b * D_OUT * 4)              # f32 output

    return pl.pallas_call(
        vlm_kernel,
        out_shape=jax.ShapeDtypeStruct((b, D_OUT), jnp.float32),
        grid_spec=pltpu.PrefetchScalarGridSpec(
            num_scalar_prefetch=1,                  # text_ids -> SMEM
            grid=(D_OUT // tn,),
            in_specs=[
                pl.BlockSpec((b, D_IMG), lambda j, ids: (0, 0)),   # image f32
                pl.BlockSpec((D_IMG, tn), lambda j, ids: (0, j)),  # W_img_eff
                pl.BlockSpec((VOCAB, tn), lambda j, ids: (0, j)),  # T_eff
                pl.BlockSpec((1, tn), lambda j, ids: (0, j)),      # b_eff
            ],
            out_specs=pl.BlockSpec((b, tn), lambda j, ids: (0, j)),
        ),
        compiler_params=pltpu.CompilerParams(
            dimension_semantics=("parallel",),      # 2-way core split on v7x
            vmem_limit_bytes=32 * 1024 * 1024,      # explicit; footprint ~2 MiB
        ),
        cost_estimate=pl.CostEstimate(
            flops=flops, transcendentals=0, bytes_accessed=bytes_accessed),
    )(text_ids, img, w_img, t_eff, b_eff)


def init_params(key):
    ks = jax.random.split(key, 8)
    s = 0.02
    return {
        # proxy text-embedding table (toy vocab)
        "emb": s * jax.random.normal(ks[0], (VOCAB, D), jnp.float32),
        # proxy vision encoder: 768 -> 768
        "wv": s * jax.random.normal(ks[1], (D_IMG, D), jnp.float32),
        "bv": jnp.zeros((1, D), jnp.float32),
        # proxy text encoder: 768 -> 768
        "wt": s * jax.random.normal(ks[2], (D, D), jnp.float32),
        "bt": jnp.zeros((1, D), jnp.float32),
        # fc: Linear(1536, 768), stored as the two 768-row halves of W^T
        "w1_img": s * jax.random.normal(ks[3], (D, D), jnp.float32),
        "w1_txt": s * jax.random.normal(ks[4], (D, D), jnp.float32),
        "b1": s * jax.random.normal(ks[5], (1, D), jnp.float32),
        # decoder: Linear(768, 512)
        "w2": s * jax.random.normal(ks[6], (D, D_OUT), jnp.float32),
        "b2": s * jax.random.normal(ks[7], (1, D_OUT), jnp.float32),
    }


if __name__ == "__main__":
    key = jax.random.PRNGKey(0)
    k_img, k_txt, k_par = jax.random.split(key, 3)

    image = jax.random.normal(k_img, (B, C, H, W), jnp.float32)          # NCHW
    text_ids = jax.random.randint(k_txt, (B, SEQ), 0, VOCAB, jnp.int32)  # ids
    params = init_params(k_par)

    fused = fuse_params(params)          # one-time offline weight fold
    out = vlm_forward(image, text_ids, fused)
    out = jax.block_until_ready(out)
    assert out.shape == (B, D_OUT), out.shape

    # Pure-JAX f32 reference of the original (un-folded) structured math.
    img_flat = image.reshape(B, -1)
    txt_cls = jnp.take(params["emb"], text_ids[:, 0], axis=0)
    img_feat = img_flat @ params["wv"] + params["bv"]
    txt_feat = txt_cls @ params["wt"] + params["bt"]
    h = img_feat @ params["w1_img"] + txt_feat @ params["w1_txt"] + params["b1"]
    ref = h @ params["w2"] + params["b2"]
    # bf16 folded weights / in-kernel bf16 activations -> loosened tolerance.
    assert jnp.allclose(out, ref, atol=2e-2, rtol=2e-2), \
        float(jnp.max(jnp.abs(out - ref)))

    print("KERNEL_OK")
</pallas_src>

<mosaic_0001>
module attributes {stable_mosaic.version = 11 : i64} {
  func.func @vlm_kernel(%arg0: i32, %arg1: memref<2x8xi32, #tpu.memory_space<smem>>, %arg2: memref<2x768xf32, #tpu.memory_space<vmem>>, %arg3: memref<768x512xbf16, #tpu.memory_space<vmem>>, %arg4: memref<64x512xbf16, #tpu.memory_space<vmem>>, %arg5: memref<1x512xf32, #tpu.memory_space<vmem>>, %arg6: memref<2x512xf32, #tpu.memory_space<vmem>>) attributes {dimension_semantics = [#tpu.dimension_semantics<parallel>], iteration_bounds = array<i64: 1>, scalar_prefetch = 1 : i64, scratch_operands = 0 : i64, tpu.core_type = #tpu.core_type<tc>, window_params = [{pipeline_mode = #tpu.pipeline_mode<synchronous>, transform_indices = @transform_0, window_bounds = array<i64: 2, 768>}, {transform_indices = @transform_1, window_bounds = array<i64: 768, 512>}, {transform_indices = @transform_2, window_bounds = array<i64: 64, 512>}, {transform_indices = @transform_3, window_bounds = array<i64: 1, 512>}, {transform_indices = @transform_4, window_bounds = array<i64: 2, 512>}]} {
    %c0 = arith.constant 0 : index
    %c0_0 = arith.constant 0 : index
    %0 = vector.load %arg2[%c0, %c0_0] : memref<2x768xf32, #tpu.memory_space<vmem>>, vector<2x768xf32>
    %1 = arith.truncf %0 : vector<2x768xf32> to vector<2x768xbf16>
    %c0_1 = arith.constant 0 : index
    %c0_2 = arith.constant 0 : index
    %2 = vector.load %arg3[%c0_1, %c0_2] : memref<768x512xbf16, #tpu.memory_space<vmem>>, vector<768x512xbf16>
    %cst = arith.constant dense<0.000000e+00> : vector<2x512xf32>
    %3 = tpu.matmul %1, %2, %cst {dimension_numbers = #tpu.dot_dimension_numbers<[1], [0], [0], [1], [0, 0, 1, 1], [], []>} : vector<2x768xbf16>, vector<768x512xbf16>, vector<2x512xf32> -> vector<2x512xf32>
    %4 = tpu.iota {dimensions = array<i32: 0>} : vector<2x64xi32>
    %5 = tpu.iota {dimensions = array<i32: 1>} : vector<2x64xi32>
    %c0_i32 = arith.constant 0 : i32
    %6 = vector.broadcast %c0_i32 : i32 to vector<2x64xi32>
    %c0_3 = arith.constant 0 : index
    %c0_4 = arith.constant 0 : index
    %7 = memref.load %arg1[%c0_3, %c0_4] : memref<2x8xi32, #tpu.memory_space<smem>>
    %8 = vector.broadcast %7 : i32 to vector<2x64xi32>
    %9 = arith.addi %6, %8 : vector<2x64xi32>
    %c1_i32 = arith.constant 1 : i32
    %10 = vector.broadcast %c1_i32 : i32 to vector<2x64xi32>
    %11 = arith.cmpi eq, %4, %10 : vector<2x64xi32>
    %c1 = arith.constant 1 : index
    %c0_5 = arith.constant 0 : index
    %12 = memref.load %arg1[%c1, %c0_5] : memref<2x8xi32, #tpu.memory_space<smem>>
    %13 = vector.broadcast %12 : i32 to vector<2x64xi32>
    %14 = arith.select %11, %13, %9 : vector<2x64xi1>, vector<2x64xi32>
    %15 = arith.cmpi eq, %5, %14 : vector<2x64xi32>
    %16 = arith.extui %15 : vector<2x64xi1> to vector<2x64xi32>
    %17 = arith.sitofp %16 : vector<2x64xi32> to vector<2x64xf32>
    %18 = arith.truncf %17 : vector<2x64xf32> to vector<2x64xbf16>
    %c0_6 = arith.constant 0 : index
    %c0_7 = arith.constant 0 : index
    %19 = vector.load %arg4[%c0_6, %c0_7] : memref<64x512xbf16, #tpu.memory_space<vmem>>, vector<64x512xbf16>
    %cst_8 = arith.constant dense<0.000000e+00> : vector<2x512xf32>
    %20 = tpu.matmul %18, %19, %cst_8 {dimension_numbers = #tpu.dot_dimension_numbers<[1], [0], [0], [1], [0, 0, 1, 1], [], []>} : vector<2x64xbf16>, vector<64x512xbf16>, vector<2x512xf32> -> vector<2x512xf32>
    %21 = arith.addf %3, %20 : vector<2x512xf32>
    %c0_9 = arith.constant 0 : index
    %c0_10 = arith.constant 0 : index
    %22 = vector.load %arg5[%c0_9, %c0_10] : memref<1x512xf32, #tpu.memory_space<vmem>>, vector<1x512xf32>
    %23 = vector.broadcast %22 : vector<1x512xf32> to vector<2x512xf32>
    %24 = arith.addf %21, %23 : vector<2x512xf32>
    %c0_11 = arith.constant 0 : index
    %c0_12 = arith.constant 0 : index
    %25 = vector.load %arg6[%c0_11, %c0_12] : memref<2x512xf32, #tpu.memory_space<vmem>>, vector<2x512xf32>
    tpu.vector_store %arg6[%c0_11, %c0_12], %24 {strides = array<i32>} : memref<2x512xf32, #tpu.memory_space<vmem>>, vector<2x512xf32>,
    return
  }
  func.func @transform_0(%arg0: i32, %arg1: memref<2x8xi32, #tpu.memory_space<smem>>) -> (i32, i32) {
    %c0_i32 = arith.constant 0 : i32
    %c0_i32_0 = arith.constant 0 : i32
    %c0_i32_1 = arith.constant 0 : i32
    return %c0_i32, %c0_i32_0 : i32, i32
  }
  func.func @transform_1(%arg0: i32, %arg1: memref<2x8xi32, #tpu.memory_space<smem>>) -> (i32, i32) {
    %c0_i32 = arith.constant 0 : i32
    %c0_i32_0 = arith.constant 0 : i32
    return %c0_i32, %arg0 : i32, i32
  }
  func.func @transform_2(%arg0: i32, %arg1: memref<2x8xi32, #tpu.memory_space<smem>>) -> (i32, i32) {
    %c0_i32 = arith.constant 0 : i32
    %c0_i32_0 = arith.constant 0 : i32
    return %c0_i32, %arg0 : i32, i32
  }
  func.func @transform_3(%arg0: i32, %arg1: memref<2x8xi32, #tpu.memory_space<smem>>) -> (i32, i32) {
    %c0_i32 = arith.constant 0 : i32
    %c0_i32_0 = arith.constant 0 : i32
    return %c0_i32, %arg0 : i32, i32
  }
  func.func @transform_4(%arg0: i32, %arg1: memref<2x8xi32, #tpu.memory_space<smem>>) -> (i32, i32) {
    %c0_i32 = arith.constant 0 : i32
    %c0_i32_0 = arith.constant 0 : i32
    return %c0_i32, %arg0 : i32, i32
  }
}

</mosaic_0001>

<llo_original>
// kernel: tpu_custom_call.1
$region0: #{tpu_custom_call.1}
  #allocation0 [shape = 'u32[]', space=smem, size = 0x4, offset = 0x4, fixed_abs, tag = 'smem constant byte address 0x4 - core index']
  #allocation1 [shape = 'u32[144,128]{1,0:T(1,128)}', space=vmem, size = 0x12000, scoped, tag = 'internal scratch']
  #allocation2 [shape = 's32[1]{0}', space=sflag, size = 0x4, scoped, tag = 'scoped memory for tpu_custom_call.1']
  #allocation3 [shape = 'u8[1024]{0}', space=smem, size = 0x400, scoped, tag = 'prefetched SMEM operand 0']
  %s0 = inlined_call_operand.hbm [shape: s32[2,8], index: 0, kind: input, shape index: {}]
  %s1 = inlined_call_operand.hbm [shape: f32[2,768], index: 1, kind: input, shape index: {}]
  %s2 = inlined_call_operand.hbm [shape: bf16[768,512], index: 2, kind: input, shape index: {}]
  %s3 = inlined_call_operand.hbm [shape: bf16[64,512], index: 3, kind: input, shape index: {}]
  %s4 = inlined_call_operand.vmem [shape: f32[1,512], index: 4, kind: input, shape index: {}]
  %s5 = inlined_call_operand.hbm [shape: f32[2,512], index: 5, kind: output, shape index: {}]
  %s6 = sld [smem:[#allocation0]]
  $region38: #{tpu_custom_call.1} parent=0
    _
  %s8 = ssub.s32 1, %s6
  %s9 = scalar_select 0, %s8, %s6
  %11 = dma.hbm_to_smem %s0, 32, [#allocation3], [#allocation2]
  %12 = dma.done [#allocation2], 32
  %13 = sfence
  $region1: #{tpu_custom_call.1} parent=0
    #allocation4 [shape = 'u8[6144]{0}', space=vmem, size = 0x1800, scoped, tag = 'input window, operand 1, single buffered']
    #allocation5 [shape = 's32[1]{0}', space=sflag, size = 0x4, scoped, tag = 'scoped memory for tpu_custom_call.1']
    #allocation6 [shape = 's32[1]{0}', space=sflag, size = 0x4, scoped, tag = 'scoped memory for tpu_custom_call.1']
    #allocation7 [shape = 'u8[786432]{0}', space=vmem, size = 0xc0000, scoped, tag = 'input window, operand 2, single buffered']
    #allocation8 [shape = 's32[1]{0}', space=sflag, size = 0x4, scoped, tag = 'scoped memory for tpu_custom_call.1']
    #allocation9 [shape = 'u8[65536]{0}', space=vmem, size = 0x10000, scoped, tag = 'input window, operand 3, single buffered']
    #allocation10 [shape = 'u8[4096]{0}', space=vmem, size = 0x1000, scoped, tag = 'output window, operand 0, single buffered']
    %14 = vsyncpa [#allocation5], 0
    %15 = vsyncpa [#allocation8], 0
    %16 = vsyncpa [#allocation6], 0
    // Predicated region
    $region2: #{tpu_custom_call.1} parent=1 // pred_check
      _
    $region3: #{tpu_custom_call.1} parent=1 // pred_check_branch
      %18 = sbr.rel (0) target = $region5
    $region4: #{tpu_custom_call.1} parent=1 // pred_region
      %s20 = ssub.s32 192, 192
      %21 = vsyncadd [#allocation5], %s20
      %s23 = sshll.u32 [#allocation4], 4
      %s24 = int_to_ptr.vmem [resolvable:$true] %s23
      %26 = dma.hbm_to_vmem [thread:$0]  %s1, 192, %s24, [#allocation5]
    $region5: #{tpu_custom_call.1} parent=1 // pred_fallthru
      _
    // Predicated region
    $region6: #{tpu_custom_call.1} parent=1 // pred_check
      _
    $region7: #{tpu_custom_call.1} parent=1 // pred_check_branch
      %28 = sbr.rel (0) target = $region9
    $region8: #{tpu_custom_call.1} parent=1 // pred_region
      %s30 = ssub.s32 24576, 24576
      %31 = vsyncadd [#allocation8], %s30
      %s32 = sshll.u32 [#allocation7], 4
      %s33 = int_to_ptr.vmem [resolvable:$true] %s32
      %38 = dma.hbm_to_vmem [thread:$0]  %s2, 24576, %s33, [#allocation8], 256, 256, 16
    $region9: #{tpu_custom_call.1} parent=1 // pred_fallthru
      _
    // Predicated region
    $region10: #{tpu_custom_call.1} parent=1 // pred_check
      _
    $region11: #{tpu_custom_call.1} parent=1 // pred_check_branch
      %40 = sbr.rel (0) target = $region13
    $region12: #{tpu_custom_call.1} parent=1 // pred_region
      %s42 = ssub.s32 2048, 2048
      %43 = vsyncadd [#allocation8], %s42
      %s44 = sshll.u32 [#allocation9], 4
      %s45 = int_to_ptr.vmem [resolvable:$true] %s44
      %50 = dma.hbm_to_vmem [thread:$0]  %s3, 2048, %s45, [#allocation8], 256, 256, 16
    $region13: #{tpu_custom_call.1} parent=1 // pred_fallthru
      _
    // Predicated region
    $region14: #{tpu_custom_call.1} parent=1 // pred_check
      _
    $region15: #{tpu_custom_call.1} parent=1 // pred_check_branch
      %52 = sbr.rel (0) target = $region17
    $region16: #{tpu_custom_call.1} parent=1 // pred_region
      _
    $region17: #{tpu_custom_call.1} parent=1 // pred_fallthru
      _
    // Predicated region
    $region18: #{tpu_custom_call.1} parent=1 // pred_check
      _
    $region19: #{tpu_custom_call.1} parent=1 // pred_check_branch
      %54 = sbr.rel (0) target = $region21
    $region20: #{tpu_custom_call.1} parent=1 // pred_region
      %55 = dma.done [#allocation5], 192
    $region21: #{tpu_custom_call.1} parent=1 // pred_fallthru
      _
    // Predicated region
    $region22: #{tpu_custom_call.1} parent=1 // pred_check
      _
    $region23: #{tpu_custom_call.1} parent=1 // pred_check_branch
      %57 = sbr.rel (0) target = $region25
    $region24: #{tpu_custom_call.1} parent=1 // pred_region
      %58 = dma.done [#allocation8], 24576
    $region25: #{tpu_custom_call.1} parent=1 // pred_fallthru
      _
    // Predicated region
    $region26: #{tpu_custom_call.1} parent=1 // pred_check
      _
    $region27: #{tpu_custom_call.1} parent=1 // pred_check_branch
      %60 = sbr.rel (0) target = $region29
    $region28: #{tpu_custom_call.1} parent=1 // pred_region
      %61 = dma.done [#allocation8], 2048
    $region29: #{tpu_custom_call.1} parent=1 // pred_fallthru
      _
    %v63 = vld [vmem:[#allocation4] sm:$0xff]
    %v64 = vld [vmem:[#allocation4 + $0x8] sm:$0xf]
    %v67 = vcombine.high %v63, %v63
    %v69 = vunpack.c.l.s4 1983009808
    %v70 = vunpack.c.0.s8 %v69
    %v71 = vlaneseq
    %v72 = vshrl.u32 %v71, 7
    %v73 = vsub.s32 %v70, %v72
    %v74 = vrot.slane %v63, %v73
    %v76 = vunpack.c.l.s4 1983009808
    %v77 = vunpack.c.0.s8 %v76
    %v78 = vlaneseq
    %v79 = vshrl.u32 %v78, 7
    %v80 = vsub.s32 %v77, %v79
    %v81 = vrot.slane %v67, %v80
    %v82 = vcombine.high %v74, %v74
    %v83 = vcombine.high %v81, %v81
    %v85 = vunpack.c.l.s4 1983009808
    %v86 = vunpack.c.0.s8 %v85
    %v87 = vlaneseq
    %v88 = vshrl.u32 %v87, 7
    %v89 = vsub.s32 %v86, %v88
    %v90 = vrot.slane %v64, %v89
    %v91 = vcombine.high %v90, %v90
    %v98 = vpack.c.bf16 %v74, %v74
    %v99 = vpack.c.bf16 %v82, %v82
    %v100 = vpack.c.bf16 %v81, %v81
    %v101 = vpack.c.bf16 %v83, %v83
    %v102 = vpack.c.bf16 %v90, %v90
    %v103 = vpack.c.bf16 %v91, %v91
    %v104 = vld [vmem:[#allocation7] sm:$0xff]
    %v105 = vld [vmem:[#allocation7 + $0x8] sm:$0xff]
    %v106 = vld [vmem:[#allocation7 + $0x10] sm:$0xff]
    %v107 = vld [vmem:[#allocation7 + $0x18] sm:$0xff]
    %v108 = vld [vmem:[#allocation7 + $0x20] sm:$0xff]
    %v109 = vld [vmem:[#allocation7 + $0x28] sm:$0xff]
    %v110 = vld [vmem:[#allocation7 + $0x30] sm:$0xff]
    %v111 = vld [vmem:[#allocation7 + $0x38] sm:$0xff]
    %v112 = vld [vmem:[#allocation7 + $0x40] sm:$0xff]
    %v113 = vld [vmem:[#allocation7 + $0x48] sm:$0xff]
    %v114 = vld [vmem:[#allocation7 + $0x50] sm:$0xff]
    %v115 = vld [vmem:[#allocation7 + $0x58] sm:$0xff]
    %v116 = vld [vmem:[#allocation7 + $0x60] sm:$0xff]
    %v117 = vld [vmem:[#allocation7 + $0x68] sm:$0xff]
    %v118 = vld [vmem:[#allocation7 + $0x70] sm:$0xff]
    %v119 = vld [vmem:[#allocation7 + $0x78] sm:$0xff]
    %v120 = vld [vmem:[#allocation7 + $0x80] sm:$0xff]
    %v121 = vld [vmem:[#allocation7 + $0x88] sm:$0xff]
    %v122 = vld [vmem:[#allocation7 + $0x90] sm:$0xff]
    %v123 = vld [vmem:[#allocation7 + $0x98] sm:$0xff]
    %v124 = vld [vmem:[#allocation7 + $0xa0] sm:$0xff]
    %v125 = vld [vmem:[#allocation7 + $0xa8] sm:$0xff]
    %v126 = vld [vmem:[#allocation7 + $0xb0] sm:$0xff]
    %v127 = vld [vmem:[#allocation7 + $0xb8] sm:$0xff]
    %v128 = vld [vmem:[#allocation7 + $0xc0] sm:$0xff]
    %v129 = vld [vmem:[#allocation7 + $0xc8] sm:$0xff]
    %v130 = vld [vmem:[#allocation7 + $0xd0] sm:$0xff]
    %v131 = vld [vmem:[#allocation7 + $0xd8] sm:$0xff]
    %v132 = vld [vmem:[#allocation7 + $0xe0] sm:$0xff]
    %v133 = vld [vmem:[#allocation7 + $0xe8] sm:$0xff]
    %v134 = vld [vmem:[#allocation7 + $0xf0] sm:$0xff]
    %v135 = vld [vmem:[#allocation7 + $0xf8] sm:$0xff]
    %v136 = vld [vmem:[#allocation7 + $0x100] sm:$0xff]
    %v137 = vld [vmem:[#allocation7 + $0x108] sm:$0xff]
    %v138 = vld [vmem:[#allocation7 + $0x110] sm:$0xff]
    %v139 = vld [vmem:[#allocation7 + $0x118] sm:$0xff]
    %v140 = vld [vmem:[#allocation7 + $0x120] sm:$0xff]
    %v141 = vld [vmem:[#allocation7 + $0x128] sm:$0xff]
    %v142 = vld [vmem:[#allocation7 + $0x130] sm:$0xff]
    %v143 = vld [vmem:[#allocation7 + $0x138] sm:$0xff]
    %v144 = vld [vmem:[#allocation7 + $0x140] sm:$0xff]
    %v145 = vld [vmem:[#allocation7 + $0x148] sm:$0xff]
    %v146 = vld [vmem:[#allocation7 + $0x150] sm:$0xff]
    %v147 = vld [vmem:[#allocation7 + $0x158] sm:$0xff]
    %v148 = vld [vmem:[#allocation7 + $0x160] sm:$0xff]
    %v149 = vld [vmem:[#allocation7 + $0x168] sm:$0xff]
    %v150 = vld [vmem:[#allocation7 + $0x170] sm:$0xff]
    %v151 = vld [vmem:[#allocation7 + $0x178] sm:$0xff]
    %v152 = vld [vmem:[#allocation7 + $0x180] sm:$0xff]
    %v153 = vld [vmem:[#allocation7 + $0x188] sm:$0xff]
    %v154 = vld [vmem:[#allocation7 + $0x190] sm:$0xff]
    %v155 = vld [vmem:[#allocation7 + $0x198] sm:$0xff]
    %v156 = vld [vmem:[#allocation7 + $0x1a0] sm:$0xff]
    %v157 = vld [vmem:[#allocation7 + $0x1a8] sm:$0xff]
    %v158 = vld [vmem:[#allocation7 + $0x1b0] sm:$0xff]
    %v159 = vld [vmem:[#allocation7 + $0x1b8] sm:$0xff]
    %v160 = vld [vmem:[#allocation7 + $0x1c0] sm:$0xff]
    %v161 = vld [vmem:[#allocation7 + $0x1c8] sm:$0xff]
    %v162 = vld [vmem:[#allocation7 + $0x1d0] sm:$0xff]
    %v163 = vld [vmem:[#allocation7 + $0x1d8] sm:$0xff]
    %v164 = vld [vmem:[#allocation7 + $0x1e0] sm:$0xff]
    %v165 = vld [vmem:[#allocation7 + $0x1e8] sm:$0xff]
    %v166 = vld [vmem:[#allocation7 + $0x1f0] sm:$0xff]
    %v167 = vld [vmem:[#allocation7 + $0x1f8] sm:$0xff]
    %v168 = vld [vmem:[#allocation7 + $0x200] sm:$0xff]
    %v169 = vld [vmem:[#allocation7 + $0x208] sm:$0xff]
    %v170 = vld [vmem:[#allocation7 + $0x210] sm:$0xff]
    %v171 = vld [vmem:[#allocation7 + $0x218] sm:$0xff]
    %v172 = vld [vmem:[#allocation7 + $0x220] sm:$0xff]
    %v173 = vld [vmem:[#allocation7 + $0x228] sm:$0xff]
    %v174 = vld [vmem:[#allocation7 + $0x230] sm:$0xff]
    %v175 = vld [vmem:[#allocation7 + $0x238] sm:$0xff]
    %v176 = vld [vmem:[#allocation7 + $0x240] sm:$0xff]
    %v177 = vld [vmem:[#allocation7 + $0x248] sm:$0xff]
    %v178 = vld [vmem:[#allocation7 + $0x250] sm:$0xff]
    %v179 = vld [vmem:[#allocation7 + $0x258] sm:$0xff]
    %v180 = vld [vmem:[#allocation7 + $0x260] sm:$0xff]
    %v181 = vld [vmem:[#allocation7 + $0x268] sm:$0xff]
    %v182 = vld [vmem:[#allocation7 + $0x270] sm:$0xff]
    %v183 = vld [vmem:[#allocation7 + $0x278] sm:$0xff]
    %v184 = vld [vmem:[#allocation7 + $0x280] sm:$0xff]
    %v185 = vld [vmem:[#allocation7 + $0x288] sm:$0xff]
    %v186 = vld [vmem:[#allocation7 + $0x290] sm:$0xff]
    %v187 = vld [vmem:[#allocation7 + $0x298] sm:$0xff]
    %v188 = vld [vmem:[#allocation7 + $0x2a0] sm:$0xff]
    %v189 = vld [vmem:[#allocation7 + $0x2a8] sm:$0xff]
    %v190 = vld [vmem:[#allocation7 + $0x2b0] sm:$0xff]
    %v191 = vld [vmem:[#allocation7 + $0x2b8] sm:$0xff]
    %v192 = vld [vmem:[#allocation7 + $0x2c0] sm:$0xff]
    %v193 = vld [vmem:[#allocation7 + $0x2c8] sm:$0xff]
    %v194 = vld [vmem:[#allocation7 + $0x2d0] sm:$0xff]
    %v195 = vld [vmem:[#allocation7 + $0x2d8] sm:$0xff]
    %v196 = vld [vmem:[#allocation7 + $0x2e0] sm:$0xff]
    %v197 = vld [vmem:[#allocation7 + $0x2e8] sm:$0xff]
    %v198 = vld [vmem:[#allocation7 + $0x2f0] sm:$0xff]
    %v199 = vld [vmem:[#allocation7 + $0x2f8] sm:$0xff]
    %v200 = vld [vmem:[#allocation7 + $0x300] sm:$0xff]
    %v201 = vld [vmem:[#allocation7 + $0x308] sm:$0xff]
    %v202 = vld [vmem:[#allocation7 + $0x310] sm:$0xff]
    %v203 = vld [vmem:[#allocation7 + $0x318] sm:$0xff]
    %v204 = vld [vmem:[#allocation7 + $0x320] sm:$0xff]
    %v205 = vld [vmem:[#allocation7 + $0x328] sm:$0xff]
    %v206 = vld [vmem:[#allocation7 + $0x330] sm:$0xff]
    %v207 = vld [vmem:[#allocation7 + $0x338] sm:$0xff]
    %v208 = vld [vmem:[#allocation7 + $0x340] sm:$0xff]
    %v209 = vld [vmem:[#allocation7 + $0x348] sm:$0xff]
    %v210 = vld [vmem:[#allocation7 + $0x350] sm:$0xff]
    %v211 = vld [vmem:[#allocation7 + $0x358] sm:$0xff]
    %v212 = vld [vmem:[#allocation7 + $0x360] sm:$0xff]
    %v213 = vld [vmem:[#allocation7 + $0x368] sm:$0xff]
    %v214 = vld [vmem:[#allocation7 + $0x370] sm:$0xff]
    %v215 = vld [vmem:[#allocation7 + $0x378] sm:$0xff]
    %v216 = vld [vmem:[#allocation7 + $0x380] sm:$0xff]
    %v217 = vld [vmem:[#allocation7 + $0x388] sm:$0xff]
    %v218 = vld [vmem:[#allocation7 + $0x390] sm:$0xff]
    %v219 = vld [vmem:[#allocation7 + $0x398] sm:$0xff]
    %v220 = vld [vmem:[#allocation7 + $0x3a0] sm:$0xff]
    %v221 = vld [vmem:[#allocation7 + $0x3a8] sm:$0xff]
    %v222 = vld [vmem:[#allocation7 + $0x3b0] sm:$0xff]
    %v223 = vld [vmem:[#allocation7 + $0x3b8] sm:$0xff]
    %v224 = vld [vmem:[#allocation7 + $0x3c0] sm:$0xff]
    %v225 = vld [vmem:[#allocation7 + $0x3c8] sm:$0xff]
    %v226 = vld [vmem:[#allocation7 + $0x3d0] sm:$0xff]
    %v227 = vld [vmem:[#allocation7 + $0x3d8] sm:$0xff]
    %v228 = vld [vmem:[#allocation7 + $0x3e0] sm:$0xff]
    %v229 = vld [vmem:[#allocation7 + $0x3e8] sm:$0xff]
    %v230 = vld [vmem:[#allocation7 + $0x3f0] sm:$0xff]
    %v231 = vld [vmem:[#allocation7 + $0x3f8] sm:$0xff]
    %v232 = vld [vmem:[#allocation7 + $0x400] sm:$0xff]
    %v233 = vld [vmem:[#allocation7 + $0x408] sm:$0xff]
    %v234 = vld [vmem:[#allocation7 + $0x410] sm:$0xff]
    %v235 = vld [vmem:[#allocation7 + $0x418] sm:$0xff]
    %v236 = vld [vmem:[#allocation7 + $0x420] sm:$0xff]
    %v237 = vld [vmem:[#allocation7 + $0x428] sm:$0xff]
    %v238 = vld [vmem:[#allocation7 + $0x430] sm:$0xff]
    %v239 = vld [vmem:[#allocation7 + $0x438] sm:$0xff]
    %v240 = vld [vmem:[#allocation7 + $0x440] sm:$0xff]
    %v241 = vld [vmem:[#allocation7 + $0x448] sm:$0xff]
    %v242 = vld [vmem:[#allocation7 + $0x450] sm:$0xff]
    %v243 = vld [vmem:[#allocation7 + $0x458] sm:$0xff]
    %v244 = vld [vmem:[#allocation7 + $0x460] sm:$0xff]
    %v245 = vld [vmem:[#allocation7 + $0x468] sm:$0xff]
    %v246 = vld [vmem:[#allocation7 + $0x470] sm:$0xff]
    %v247 = vld [vmem:[#allocation7 + $0x478] sm:$0xff]
    %v248 = vld [vmem:[#allocation7 + $0x480] sm:$0xff]
    %v249 = vld [vmem:[#allocation7 + $0x488] sm:$0xff]
    %v250 = vld [vmem:[#allocation7 + $0x490] sm:$0xff]
    %v251 = vld [vmem:[#allocation7 + $0x498] sm:$0xff]
    %v252 = vld [vmem:[#allocation7 + $0x4a0] sm:$0xff]
    %v253 = vld [vmem:[#allocation7 + $0x4a8] sm:$0xff]
    %v254 = vld [vmem:[#allocation7 + $0x4b0] sm:$0xff]
    %v255 = vld [vmem:[#allocation7 + $0x4b8] sm:$0xff]
    %v256 = vld [vmem:[#allocation7 + $0x4c0] sm:$0xff]
    %v257 = vld [vmem:[#allocation7 + $0x4c8] sm:$0xff]
    %v258 = vld [vmem:[#allocation7 + $0x4d0] sm:$0xff]
    %v259 = vld [vmem:[#allocation7 + $0x4d8] sm:$0xff]
    %v260 = vld [vmem:[#allocation7 + $0x4e0] sm:$0xff]
    %v261 = vld [vmem:[#allocation7 + $0x4e8] sm:$0xff]
    %v262 = vld [vmem:[#allocation7 + $0x4f0] sm:$0xff]
    %v263 = vld [vmem:[#allocation7 + $0x4f8] sm:$0xff]
    %v264 = vld [vmem:[#allocation7 + $0x500] sm:$0xff]
    %v265 = vld [vmem:[#allocation7 + $0x508] sm:$0xff]
    %v266 = vld [vmem:[#allocation7 + $0x510] sm:$0xff]
    %v267 = vld [vmem:[#allocation7 + $0x518] sm:$0xff]
    %v268 = vld [vmem:[#allocation7 + $0x520] sm:$0xff]
    %v269 = vld [vmem:[#allocation7 + $0x528] sm:$0xff]
    %v270 = vld [vmem:[#allocation7 + $0x530] sm:$0xff]
    %v271 = vld [vmem:[#allocation7 + $0x538] sm:$0xff]
    %v272 = vld [vmem:[#allocation7 + $0x540] sm:$0xff]
    %v273 = vld [vmem:[#allocation7 + $0x548] sm:$0xff]
    %v274 = vld [vmem:[#allocation7 + $0x550] sm:$0xff]
    %v275 = vld [vmem:[#allocation7 + $0x558] sm:$0xff]
    %v276 = vld [vmem:[#allocation7 + $0x560] sm:$0xff]
    %v277 = vld [vmem:[#allocation7 + $0x568] sm:$0xff]
    %v278 = vld [vmem:[#allocation7 + $0x570] sm:$0xff]
    %v279 = vld [vmem:[#allocation7 + $0x578] sm:$0xff]
    %v280 = vld [vmem:[#allocation7 + $0x580] sm:$0xff]
    %v281 = vld [vmem:[#allocation7 + $0x588] sm:$0xff]
    %v282 = vld [vmem:[#allocation7 + $0x590] sm:$0xff]
    %v283 = vld [vmem:[#allocation7 + $0x598] sm:$0xff]
    %v284 = vld [vmem:[#allocation7 + $0x5a0] sm:$0xff]
    %v285 = vld [vmem:[#allocation7 + $0x5a8] sm:$0xff]
    %v286 = vld [vmem:[#allocation7 + $0x5b0] sm:$0xff]
    %v287 = vld [vmem:[#allocation7 + $0x5b8] sm:$0xff]
    %v288 = vld [vmem:[#allocation7 + $0x5c0] sm:$0xff]
    %v289 = vld [vmem:[#allocation7 + $0x5c8] sm:$0xff]
    %v290 = vld [vmem:[#allocation7 + $0x5d0] sm:$0xff]
    %v291 = vld [vmem:[#allocation7 + $0x5d8] sm:$0xff]
    %v292 = vld [vmem:[#allocation7 + $0x5e0] sm:$0xff]
    %v293 = vld [vmem:[#allocation7 + $0x5e8] sm:$0xff]
    %v294 = vld [vmem:[#allocation7 + $0x5f0] sm:$0xff]
    %v295 = vld [vmem:[#allocation7 + $0x5f8] sm:$0xff]
    %v296 = vlaneseq
    %v297 = vshrl.u32 %v296, 7
    %v298 = vlaneseq
    %v299 = vand.u32 %v298, 127
    %s300 = sld [smem:[#allocation3]]
    %v301 = vstv %s300
    %vm302 = vcmp.eq.s32.totalorder %v297, 1
    %s303 = sld [smem:[#allocation3 + $0x80]]
    %v304 = vstv %s303
    %v305 = vsel %vm302, %v304, %v301
    %vm306 = vcmp.eq.s32.totalorder %v299, %v305
    %v307 = vsel %vm306, 1, 0
    %v308 = vcvt.s32.f32 %v307
    %v309 = vpack.c.bf16 %v308, %v308
    %v310 = vld [vmem:[#allocation9] sm:$0xff]
    %v311 = vld [vmem:[#allocation9 + $0x8] sm:$0xff]
    %v312 = vld [vmem:[#allocation9 + $0x10] sm:$0xff]
    %v313 = vld [vmem:[#allocation9 + $0x18] sm:$0xff]
    %v314 = vld [vmem:[#allocation9 + $0x20] sm:$0xff]
    %v315 = vld [vmem:[#allocation9 + $0x28] sm:$0xff]
    %v316 = vld [vmem:[#allocation9 + $0x30] sm:$0xff]
    %v317 = vld [vmem:[#allocation9 + $0x38] sm:$0xff]
    %v318 = vld [vmem:[#allocation9 + $0x40] sm:$0xff]
    %v319 = vld [vmem:[#allocation9 + $0x48] sm:$0xff]
    %v320 = vld [vmem:[#allocation9 + $0x50] sm:$0xff]
    %v321 = vld [vmem:[#allocation9 + $0x58] sm:$0xff]
    %v322 = vld [vmem:[#allocation9 + $0x60] sm:$0xff]
    %v323 = vld [vmem:[#allocation9 + $0x68] sm:$0xff]
    %v324 = vld [vmem:[#allocation9 + $0x70] sm:$0xff]
    %v325 = vld [vmem:[#allocation9 + $0x78] sm:$0xff]
    %v342 = vunpack.c.l.b16 %v310
    %v343 = vunpack.c.h.b16 %v310
    %v344 = vunpack.c.l.b16 %v311
    %v345 = vunpack.c.h.b16 %v311
    %v346 = vunpack.c.l.b16 %v312
    %v347 = vunpack.c.h.b16 %v312
    %v348 = vunpack.c.l.b16 %v313
    %v349 = vunpack.c.h.b16 %v313
    %v350 = vunpack.c.l.b16 %v314
    %v351 = vunpack.c.h.b16 %v314
    %v352 = vunpack.c.l.b16 %v315
    %v353 = vunpack.c.h.b16 %v315
    %v354 = vunpack.c.l.b16 %v316
    %v355 = vunpack.c.h.b16 %v316
    %v356 = vunpack.c.l.b16 %v317
    %v357 = vunpack.c.h.b16 %v317
    %v358 = vunpack.c.l.b16 %v318
    %v359 = vunpack.c.h.b16 %v318
    %v360 = vunpack.c.l.b16 %v319
    %v361 = vunpack.c.h.b16 %v319
    %v362 = vunpack.c.l.b16 %v320
    %v363 = vunpack.c.h.b16 %v320
    %v364 = vunpack.c.l.b16 %v321
    %v365 = vunpack.c.h.b16 %v321
    %v366 = vunpack.c.l.b16 %v322
    %v367 = vunpack.c.h.b16 %v322
    %v368 = vunpack.c.l.b16 %v323
    %v369 = vunpack.c.h.b16 %v323
    %v370 = vunpack.c.l.b16 %v324
    %v371 = vunpack.c.h.b16 %v324
    %v372 = vunpack.c.l.b16 %v325
    %v373 = vunpack.c.h.b16 %v325
    %v374 = vpack.c.b16 %v346, %v342
    %v375 = vpack.c.b16 %v347, %v343
    %v376 = vpack.c.b16 %v348, %v344
    %v377 = vpack.c.b16 %v349, %v345
    %v378 = vpack.c.b16 %v354, %v350
    %v379 = vpack.c.b16 %v355, %v351
    %v380 = vpack.c.b16 %v356, %v352
    %v381 = vpack.c.b16 %v357, %v353
    %v382 = vpack.c.b16 %v362, %v358
    %v383 = vpack.c.b16 %v363, %v359
    %v384 = vpack.c.b16 %v364, %v360
    %v385 = vpack.c.b16 %v365, %v361
    %v386 = vpack.c.b16 %v370, %v366
    %v387 = vpack.c.b16 %v371, %v367
    %v388 = vpack.c.b16 %v372, %v368
    %v389 = vpack.c.b16 %v373, %v369
    %vm406 = vcmask 523264
    %v408 = vsel %vm406, %v309, 0
    %410 = vmatprep.subr.bf16.mxu0 %v375
    %411 = vmatpush1.bf16.msra.mxu0 %v374
    %412 = vmatprep.subr.bf16.mxu0 %v379
    %413 = vmatpush1.bf16.msra.mxu0 %v378
    %414 = vmatprep.subr.bf16.mxu0 %v383
    %415 = vmatpush1.bf16.msra.mxu0 %v382
    %416 = vmatprep.subr.bf16.mxu0 %v387
    %417 = vmatpush1.bf16.msra.mxu0 %v386
    %418 = vmatprep.subr.bf16.mxu0 0
    %419 = vmatpush1.bf16.msra.mxu0 0
    %420 = vmatprep.subr.bf16.mxu0 0
    %421 = vmatpush1.bf16.msra.mxu0 0
    %422 = vmatprep.subr.bf16.mxu0 0
    %423 = vmatpush1.bf16.msra.mxu0 0
    %424 = vmatprep.subr.bf16.mxu0 0
    %425 = vmatpush1.bf16.msra.mxu0 0
    %426 = vmatprep.subr.bf16.mxu0 0
    %427 = vmatpush1.bf16.msra.mxu0 0
    %428 = vmatprep.subr.bf16.mxu0 0
    %429 = vmatpush1.bf16.msra.mxu0 0
    %430 = vmatprep.subr.bf16.mxu0 0
    %431 = vmatpush1.bf16.msra.mxu0 0
    %432 = vmatprep.subr.bf16.mxu0 0
    %433 = vmatpush1.bf16.msra.mxu0 0
    %434 = vmatprep.subr.bf16.mxu0 0
    %435 = vmatpush1.bf16.msra.mxu0 0
    %436 = vmatprep.subr.bf16.mxu0 0
    %437 = vmatpush1.bf16.msra.mxu0 0
    %438 = vmatprep.subr.bf16.mxu0 0
    %439 = vmatpush1.bf16.msra.mxu0 0
    %440 = vmatprep.subr.bf16.mxu0 0
    %441 = vmatpush1.bf16.msra.mxu0 0
    %442 = vmatprep.mubr.bf16.mxu0 0
    %443 = vmatmul.mubr.bf16.gmra.mrb[0].mxu0 %v408
    %v444 = vpop.f32.mrb[0].mxu0
    %v445 = vadd.f32 0.0, %v444
    %v446 = vpop.f32.mrb[0].mxu0
    %v447 = vadd.f32 0.0, %v446
    %v448 = vpop.f32.mrb[0].mxu0
    %v449 = vpop.f32.mrb[0].mxu0
    %450 = vdwg.mxu0
    %451 = vmatprep.subr.bf16.mxu0 %v377
    %452 = vmatpush1.bf16.msra.mxu0 %v376
    %453 = vmatprep.subr.bf16.mxu0 %v381
    %454 = vmatpush1.bf16.msra.mxu0 %v380
    %455 = vmatprep.subr.bf16.mxu0 %v385
    %456 = vmatpush1.bf16.msra.mxu0 %v384
    %457 = vmatprep.subr.bf16.mxu0 %v389
    %458 = vmatpush1.bf16.msra.mxu0 %v388
    %459 = vmatprep.subr.bf16.mxu0 0
    %460 = vmatpush1.bf16.msra.mxu0 0
    %461 = vmatprep.subr.bf16.mxu0 0
    %462 = vmatpush1.bf16.msra.mxu0 0
    %463 = vmatprep.subr.bf16.mxu0 0
    %464 = vmatpush1.bf16.msra.mxu0 0
    %465 = vmatprep.subr.bf16.mxu0 0
    %466 = vmatpush1.bf16.msra.mxu0 0
    %467 = vmatprep.subr.bf16.mxu0 0
    %468 = vmatpush1.bf16.msra.mxu0 0
    %469 = vmatprep.subr.bf16.mxu0 0
    %470 = vmatpush1.bf16.msra.mxu0 0
    %471 = vmatprep.subr.bf16.mxu0 0
    %472 = vmatpush1.bf16.msra.mxu0 0
    %473 = vmatprep.subr.bf16.mxu0 0
    %474 = vmatpush1.bf16.msra.mxu0 0
    %475 = vmatprep.subr.bf16.mxu0 0
    %476 = vmatpush1.bf16.msra.mxu0 0
    %477 = vmatprep.subr.bf16.mxu0 0
    %478 = vmatpush1.bf16.msra.mxu0 0
    %479 = vmatprep.subr.bf16.mxu0 0
    %480 = vmatpush1.bf16.msra.mxu0 0
    %481 = vmatprep.subr.bf16.mxu0 0
    %482 = vmatpush1.bf16.msra.mxu0 0
    %483 = vmatprep.mubr.bf16.mxu0 0
    %484 = vmatmul.mubr.bf16.gmra.mrb[0].mxu0 %v408
    %v485 = vpop.f32.mrb[0].mxu0
    %v486 = vadd.f32 0.0, %v485
    %v487 = vpop.f32.mrb[0].mxu0
    %v488 = vadd.f32 0.0, %v487
    %v489 = vpop.f32.mrb[0].mxu0
    %v490 = vpop.f32.mrb[0].mxu0
    %491 = vdwg.mxu0
    %v684 = vunpack.c.l.b16 %v104
    %v685 = vunpack.c.h.b16 %v104
    %v686 = vunpack.c.l.b16 %v105
    %v687 = vunpack.c.h.b16 %v105
    %v688 = vunpack.c.l.b16 %v106
    %v689 = vunpack.c.h.b16 %v106
    %v690 = vunpack.c.l.b16 %v107
    %v691 = vunpack.c.h.b16 %v107
    %v692 = vunpack.c.l.b16 %v108
    %v693 = vunpack.c.h.b16 %v108
    %v694 = vunpack.c.l.b16 %v109
    %v695 = vunpack.c.h.b16 %v109
    %v696 = vunpack.c.l.b16 %v110
    %v697 = vunpack.c.h.b16 %v110
    %v698 = vunpack.c.l.b16 %v111
    %v699 = vunpack.c.h.b16 %v111
    %v700 = vunpack.c.l.b16 %v112
    %v701 = vunpack.c.h.b16 %v112
    %v702 = vunpack.c.l.b16 %v113
    %v703 = vunpack.c.h.b16 %v113
    %v704 = vunpack.c.l.b16 %v114
    %v705 = vunpack.c.h.b16 %v114
    %v706 = vunpack.c.l.b16 %v115
    %v707 = vunpack.c.h.b16 %v115
    %v708 = vunpack.c.l.b16 %v116
    %v709 = vunpack.c.h.b16 %v116
    %v710 = vunpack.c.l.b16 %v117
    %v711 = vunpack.c.h.b16 %v117
    %v712 = vunpack.c.l.b16 %v118
    %v713 = vunpack.c.h.b16 %v118
    %v714 = vunpack.c.l.b16 %v119
    %v715 = vunpack.c.h.b16 %v119
    %v716 = vunpack.c.l.b16 %v120
    %v717 = vunpack.c.h.b16 %v120
    %v718 = vunpack.c.l.b16 %v121
    %v719 = vunpack.c.h.b16 %v121
    %v720 = vunpack.c.l.b16 %v122
    %v721 = vunpack.c.h.b16 %v122
    %v722 = vunpack.c.l.b16 %v123
    %v723 = vunpack.c.h.b16 %v123
    %v724 = vunpack.c.l.b16 %v124
    %v725 = vunpack.c.h.b16 %v124
    %v726 = vunpack.c.l.b16 %v125
    %v727 = vunpack.c.h.b16 %v125
    %v728 = vunpack.c.l.b16 %v126
    %v729 = vunpack.c.h.b16 %v126
    %v730 = vunpack.c.l.b16 %v127
    %v731 = vunpack.c.h.b16 %v127
    %v732 = vunpack.c.l.b16 %v128
    %v733 = vunpack.c.h.b16 %v128
    %v734 = vunpack.c.l.b16 %v129
    %v735 = vunpack.c.h.b16 %v129
    %v736 = vunpack.c.l.b16 %v130
    %v737 = vunpack.c.h.b16 %v130
    %v738 = vunpack.c.l.b16 %v131
    %v739 = vunpack.c.h.b16 %v131
    %v740 = vunpack.c.l.b16 %v132
    %v741 = vunpack.c.h.b16 %v132
    %v742 = vunpack.c.l.b16 %v133
    %v743 = vunpack.c.h.b16 %v133
    %v744 = vunpack.c.l.b16 %v134
    %v745 = vunpack.c.h.b16 %v134
    %v746 = vunpack.c.l.b16 %v135
    %v747 = vunpack.c.h.b16 %v135
    %v748 = vunpack.c.l.b16 %v136
    %v749 = vunpack.c.h.b16 %v136
    %v750 = vunpack.c.l.b16 %v137
    %v751 = vunpack.c.h.b16 %v137
    %v752 = vunpack.c.l.b16 %v138
    %v753 = vunpack.c.h.b16 %v138
    %v754 = vunpack.c.l.b16 %v139
    %v755 = vunpack.c.h.b16 %v139
    %v756 = vunpack.c.l.b16 %v140
    %v757 = vunpack.c.h.b16 %v140
    %v758 = vunpack.c.l.b16 %v141
    %v759 = vunpack.c.h.b16 %v141
    %v760 = vunpack.c.l.b16 %v142
    %v761 = vunpack.c.h.b16 %v142
    %v762 = vunpack.c.l.b16 %v143
    %v763 = vunpack.c.h.b16 %v143
    %v764 = vunpack.c.l.b16 %v144
    %v765 = vunpack.c.h.b16 %v144
    %v766 = vunpack.c.l.b16 %v145
    %v767 = vunpack.c.h.b16 %v145
    %v768 = vunpack.c.l.b16 %v146
    %v769 = vunpack.c.h.b16 %v146
    %v770 = vunpack.c.l.b16 %v147
    %v771 = vunpack.c.h.b16 %v147
    %v772 = vunpack.c.l.b16 %v148
    %v773 = vunpack.c.h.b16 %v148
    %v774 = vunpack.c.l.b16 %v149
    %v775 = vunpack.c.h.b16 %v149
    %v776 = vunpack.c.l.b16 %v150
    %v777 = vunpack.c.h.b16 %v150
    %v778 = vunpack.c.l.b16 %v151
    %v779 = vunpack.c.h.b16 %v151
    %v780 = vunpack.c.l.b16 %v152
    %v781 = vunpack.c.h.b16 %v152
    %v782 = vunpack.c.l.b16 %v153
    %v783 = vunpack.c.h.b16 %v153
    %v784 = vunpack.c.l.b16 %v154
    %v785 = vunpack.c.h.b16 %v154
    %v786 = vunpack.c.l.b16 %v155
    %v787 = vunpack.c.h.b16 %v155
    %v788 = vunpack.c.l.b16 %v156
    %v789 = vunpack.c.h.b16 %v156
    %v790 = vunpack.c.l.b16 %v157
    %v791 = vunpack.c.h.b16 %v157
    %v792 = vunpack.c.l.b16 %v158
    %v793 = vunpack.c.h.b16 %v158
    %v794 = vunpack.c.l.b16 %v159
    %v795 = vunpack.c.h.b16 %v159
    %v796 = vunpack.c.l.b16 %v160
    %v797 = vunpack.c.h.b16 %v160
    %v798 = vunpack.c.l.b16 %v161
    %v799 = vunpack.c.h.b16 %v161
    %v800 = vunpack.c.l.b16 %v162
    %v801 = vunpack.c.h.b16 %v162
    %v802 = vunpack.c.l.b16 %v163
    %v803 = vunpack.c.h.b16 %v163
    %v804 = vunpack.c.l.b16 %v164
    %v805 = vunpack.c.h.b16 %v164
    %v806 = vunpack.c.l.b16 %v165
    %v807 = vunpack.c.h.b16 %v165
    %v808 = vunpack.c.l.b16 %v166
    %v809 = vunpack.c.h.b16 %v166
    %v810 = vunpack.c.l.b16 %v167
    %v811 = vunpack.c.h.b16 %v167
    %v812 = vunpack.c.l.b16 %v168
    %v813 = vunpack.c.h.b16 %v168
    %v814 = vunpack.c.l.b16 %v169
    %v815 = vunpack.c.h.b16 %v169
    %v816 = vunpack.c.l.b16 %v170
    %v817 = vunpack.c.h.b16 %v170
    %v818 = vunpack.c.l.b16 %v171
    %v819 = vunpack.c.h.b16 %v171
    %v820 = vunpack.c.l.b16 %v172
    %v821 = vunpack.c.h.b16 %v172
    %v822 = vunpack.c.l.b16 %v173
    %v823 = vunpack.c.h.b16 %v173
    %v824 = vunpack.c.l.b16 %v174
    %v825 = vunpack.c.h.b16 %v174
    %v826 = vunpack.c.l.b16 %v175
    %v827 = vunpack.c.h.b16 %v175
    %v828 = vunpack.c.l.b16 %v176
    %v829 = vunpack.c.h.b16 %v176
    %v830 = vunpack.c.l.b16 %v177
    %v831 = vunpack.c.h.b16 %v177
    %v832 = vunpack.c.l.b16 %v178
    %v833 = vunpack.c.h.b16 %v178
    %v834 = vunpack.c.l.b16 %v179
    %v835 = vunpack.c.h.b16 %v179
    %v836 = vunpack.c.l.b16 %v180
    %v837 = vunpack.c.h.b16 %v180
    %v838 = vunpack.c.l.b16 %v181
    %v839 = vunpack.c.h.b16 %v181
    %v840 = vunpack.c.l.b16 %v182
    %v841 = vunpack.c.h.b16 %v182
    %v842 = vunpack.c.l.b16 %v183
    %v843 = vunpack.c.h.b16 %v183
    %v844 = vunpack.c.l.b16 %v184
    %v845 = vunpack.c.h.b16 %v184
    %v846 = vunpack.c.l.b16 %v185
    %v847 = vunpack.c.h.b16 %v185
    %v848 = vunpack.c.l.b16 %v186
    %v849 = vunpack.c.h.b16 %v186
    %v850 = vunpack.c.l.b16 %v187
    %v851 = vunpack.c.h.b16 %v187
    %v852 = vunpack.c.l.b16 %v188
    %v853 = vunpack.c.h.b16 %v188
    %v854 = vunpack.c.l.b16 %v189
    %v855 = vunpack.c.h.b16 %v189
    %v856 = vunpack.c.l.b16 %v190
    %v857 = vunpack.c.h.b16 %v190
    %v858 = vunpack.c.l.b16 %v191
    %v859 = vunpack.c.h.b16 %v191
    %v860 = vunpack.c.l.b16 %v192
    %v861 = vunpack.c.h.b16 %v192
    %v862 = vunpack.c.l.b16 %v193
    %v863 = vunpack.c.h.b16 %v193
    %v864 = vunpack.c.l.b16 %v194
    %v865 = vunpack.c.h.b16 %v194
    %v866 = vunpack.c.l.b16 %v195
    %v867 = vunpack.c.h.b16 %v195
    %v868 = vunpack.c.l.b16 %v196
    %v869 = vunpack.c.h.b16 %v196
    %v870 = vunpack.c.l.b16 %v197
    %v871 = vunpack.c.h.b16 %v197
    %v872 = vunpack.c.l.b16 %v198
    %v873 = vunpack.c.h.b16 %v198
    %v874 = vunpack.c.l.b16 %v199
    %v875 = vunpack.c.h.b16 %v199
    %v876 = vunpack.c.l.b16 %v200
    %v877 = vunpack.c.h.b16 %v200
    %v878 = vunpack.c.l.b16 %v201
    %v879 = vunpack.c.h.b16 %v201
    %v880 = vunpack.c.l.b16 %v202
    %v881 = vunpack.c.h.b16 %v202
    %v882 = vunpack.c.l.b16 %v203
    %v883 = vunpack.c.h.b16 %v203
    %v884 = vunpack.c.l.b16 %v204
    %v885 = vunpack.c.h.b16 %v204
    %v886 = vunpack.c.l.b16 %v205
    %v887 = vunpack.c.h.b16 %v205
    %v888 = vunpack.c.l.b16 %v206
    %v889 = vunpack.c.h.b16 %v206
    %v890 = vunpack.c.l.b16 %v207
    %v891 = vunpack.c.h.b16 %v207
    %v892 = vunpack.c.l.b16 %v208
    %v893 = vunpack.c.h.b16 %v208
    %v894 = vunpack.c.l.b16 %v209
    %v895 = vunpack.c.h.b16 %v209
    %v896 = vunpack.c.l.b16 %v210
    %v897 = vunpack.c.h.b16 %v210
    %v898 = vunpack.c.l.b16 %v211
    %v899 = vunpack.c.h.b16 %v211
    %v900 = vunpack.c.l.b16 %v212
    %v901 = vunpack.c.h.b16 %v212
    %v902 = vunpack.c.l.b16 %v213
    %v903 = vunpack.c.h.b16 %v213
    %v904 = vunpack.c.l.b16 %v214
    %v905 = vunpack.c.h.b16 %v214
    %v906 = vunpack.c.l.b16 %v215
    %v907 = vunpack.c.h.b16 %v215
    %v908 = vunpack.c.l.b16 %v216
    %v909 = vunpack.c.h.b16 %v216
    %v910 = vunpack.c.l.b16 %v217
    %v911 = vunpack.c.h.b16 %v217
    %v912 = vunpack.c.l.b16 %v218
    %v913 = vunpack.c.h.b16 %v218
    %v914 = vunpack.c.l.b16 %v219
    %v915 = vunpack.c.h.b16 %v219
    %v916 = vunpack.c.l.b16 %v220
    %v917 = vunpack.c.h.b16 %v220
    %v918 = vunpack.c.l.b16 %v221
    %v919 = vunpack.c.h.b16 %v221
    %v920 = vunpack.c.l.b16 %v222
    %v921 = vunpack.c.h.b16 %v222
    %v922 = vunpack.c.l.b16 %v223
    %v923 = vunpack.c.h.b16 %v223
    %v924 = vunpack.c.l.b16 %v224
    %v925 = vunpack.c.h.b16 %v224
    %v926 = vunpack.c.l.b16 %v225
    %v927 = vunpack.c.h.b16 %v225
    %v928 = vunpack.c.l.b16 %v226
    %v929 = vunpack.c.h.b16 %v226
    %v930 = vunpack.c.l.b16 %v227
    %v931 = vunpack.c.h.b16 %v227
    %v932 = vunpack.c.l.b16 %v228
    %v933 = vunpack.c.h.b16 %v228
    %v934 = vunpack.c.l.b16 %v229
    %v935 = vunpack.c.h.b16 %v229
    %v936 = vunpack.c.l.b16 %v230
    %v937 = vunpack.c.h.b16 %v230
    %v938 = vunpack.c.l.b16 %v231
    %v939 = vunpack.c.h.b16 %v231
    %v940 = vunpack.c.l.b16 %v232
    %v941 = vunpack.c.h.b16 %v232
    %v942 = vunpack.c.l.b16 %v233
    %v943 = vunpack.c.h.b16 %v233
    %v944 = vunpack.c.l.b16 %v234
    %v945 = vunpack.c.h.b16 %v234
    %v946 = vunpack.c.l.b16 %v235
    %v947 = vunpack.c.h.b16 %v235
    %v948 = vunpack.c.l.b16 %v236
    %v949 = vunpack.c.h.b16 %v236
    %v950 = vunpack.c.l.b16 %v237
    %v951 = vunpack.c.h.b16 %v237
    %v952 = vunpack.c.l.b16 %v238
    %v953 = vunpack.c.h.b16 %v238
    %v954 = vunpack.c.l.b16 %v239
    %v955 = vunpack.c.h.b16 %v239
    %v956 = vunpack.c.l.b16 %v240
    %v957 = vunpack.c.h.b16 %v240
    %v958 = vunpack.c.l.b16 %v241
    %v959 = vunpack.c.h.b16 %v241
    %v960 = vunpack.c.l.b16 %v242
    %v961 = vunpack.c.h.b16 %v242
    %v962 = vunpack.c.l.b16 %v243
    %v963 = vunpack.c.h.b16 %v243
    %v964 = vunpack.c.l.b16 %v244
    %v965 = vunpack.c.h.b16 %v244
    %v966 = vunpack.c.l.b16 %v245
    %v967 = vunpack.c.h.b16 %v245
    %v968 = vunpack.c.l.b16 %v246
    %v969 = vunpack.c.h.b16 %v246
    %v970 = vunpack.c.l.b16 %v247
    %v971 = vunpack.c.h.b16 %v247
    %v972 = vunpack.c.l.b16 %v248
    %v973 = vunpack.c.h.b16 %v248
    %v974 = vunpack.c.l.b16 %v249
    %v975 = vunpack.c.h.b16 %v249
    %v976 = vunpack.c.l.b16 %v250
    %v977 = vunpack.c.h.b16 %v250
    %v978 = vunpack.c.l.b16 %v251
    %v979 = vunpack.c.h.b16 %v251
    %v980 = vunpack.c.l.b16 %v252
    %v981 = vunpack.c.h.b16 %v252
    %v982 = vunpack.c.l.b16 %v253
    %v983 = vunpack.c.h.b16 %v253
    %v984 = vunpack.c.l.b16 %v254
    %v985 = vunpack.c.h.b16 %v254
    %v986 = vunpack.c.l.b16 %v255
    %v987 = vunpack.c.h.b16 %v255
    %v988 = vunpack.c.l.b16 %v256
    %v989 = vunpack.c.h.b16 %v256
    %v990 = vunpack.c.l.b16 %v257
    %v991 = vunpack.c.h.b16 %v257
    %v992 = vunpack.c.l.b16 %v258
    %v993 = vunpack.c.h.b16 %v258
    %v994 = vunpack.c.l.b16 %v259
    %v995 = vunpack.c.h.b16 %v259
    %v996 = vunpack.c.l.b16 %v260
    %v997 = vunpack.c.h.b16 %v260
    %v998 = vunpack.c.l.b16 %v261
    %v999 = vunpack.c.h.b16 %v261
    %v1000 = vunpack.c.l.b16 %v262
    %v1001 = vunpack.c.h.b16 %v262
    %v1002 = vunpack.c.l.b16 %v263
    %v1003 = vunpack.c.h.b16 %v263
    %v1004 = vunpack.c.l.b16 %v264
    %v1005 = vunpack.c.h.b16 %v264
    %v1006 = vunpack.c.l.b16 %v265
    %v1007 = vunpack.c.h.b16 %v265
    %v1008 = vunpack.c.l.b16 %v266
    %v1009 = vunpack.c.h.b16 %v266
    %v1010 = vunpack.c.l.b16 %v267
    %v1011 = vunpack.c.h.b16 %v267
    %v1012 = vunpack.c.l.b16 %v268
    %v1013 = vunpack.c.h.b16 %v268
    %v1014 = vunpack.c.l.b16 %v269
    %v1015 = vunpack.c.h.b16 %v269
    %v1016 = vunpack.c.l.b16 %v270
    %v1017 = vunpack.c.h.b16 %v270
    %v1018 = vunpack.c.l.b16 %v271
    %v1019 = vunpack.c.h.b16 %v271
    %v1020 = vunpack.c.l.b16 %v272
    %v1021 = vunpack.c.h.b16 %v272
    %v1022 = vunpack.c.l.b16 %v273
    %v1023 = vunpack.c.h.b16 %v273
    %v1024 = vunpack.c.l.b16 %v274
    %v1025 = vunpack.c.h.b16 %v274
    %v1026 = vunpack.c.l.b16 %v275
    %v1027 = vunpack.c.h.b16 %v275
    %v1028 = vunpack.c.l.b16 %v276
    %v1029 = vunpack.c.h.b16 %v276
    %v1030 = vunpack.c.l.b16 %v277
    %v1031 = vunpack.c.h.b16 %v277
    %v1032 = vunpack.c.l.b16 %v278
    %v1033 = vunpack.c.h.b16 %v278
    %v1034 = vunpack.c.l.b16 %v279
    %v1035 = vunpack.c.h.b16 %v279
    %v1036 = vunpack.c.l.b16 %v280
    %v1037 = vunpack.c.h.b16 %v280
    %v1038 = vunpack.c.l.b16 %v281
    %v1039 = vunpack.c.h.b16 %v281
    %v1040 = vunpack.c.l.b16 %v282
    %v1041 = vunpack.c.h.b16 %v282
    %v1042 = vunpack.c.l.b16 %v283
    %v1043 = vunpack.c.h.b16 %v283
    %v1044 = vunpack.c.l.b16 %v284
    %v1045 = vunpack.c.h.b16 %v284
    %v1046 = vunpack.c.l.b16 %v285
    %v1047 = vunpack.c.h.b16 %v285
    %v1048 = vunpack.c.l.b16 %v286
    %v1049 = vunpack.c.h.b16 %v286
    %v1050 = vunpack.c.l.b16 %v287
    %v1051 = vunpack.c.h.b16 %v287
    %v1052 = vunpack.c.l.b16 %v288
    %v1053 = vunpack.c.h.b16 %v288
    %v1054 = vunpack.c.l.b16 %v289
    %v1055 = vunpack.c.h.b16 %v289
    %v1056 = vunpack.c.l.b16 %v290
    %v1057 = vunpack.c.h.b16 %v290
    %v1058 = vunpack.c.l.b16 %v291
    %v1059 = vunpack.c.h.b16 %v291
    %v1060 = vunpack.c.l.b16 %v292
    %v1061 = vunpack.c.h.b16 %v292
    %v1062 = vunpack.c.l.b16 %v293
    %v1063 = vunpack.c.h.b16 %v293
    %v1064 = vunpack.c.l.b16 %v294
    %v1065 = vunpack.c.h.b16 %v294
    %v1066 = vunpack.c.l.b16 %v295
    %v1067 = vunpack.c.h.b16 %v295
    %v1068 = vpack.c.b16 %v688, %v684
    %v1069 = vpack.c.b16 %v689, %v685
    %v1070 = vpack.c.b16 %v690, %v686
    %v1071 = vpack.c.b16 %v691, %v687
    %v1072 = vpack.c.b16 %v696, %v692
    %v1073 = vpack.c.b16 %v697, %v693
    %v1074 = vpack.c.b16 %v698, %v694
    %v1075 = vpack.c.b16 %v699, %v695
    %v1076 = vpack.c.b16 %v704, %v700
    %v1077 = vpack.c.b16 %v705, %v701
    %v1078 = vpack.c.b16 %v706, %v702
    %v1079 = vpack.c.b16 %v707, %v703
    %v1080 = vpack.c.b16 %v712, %v708
    %v1081 = vpack.c.b16 %v713, %v709
    %v1082 = vpack.c.b16 %v714, %v710
    %v1083 = vpack.c.b16 %v715, %v711
    %v1084 = vpack.c.b16 %v720, %v716
    %v1085 = vpack.c.b16 %v721, %v717
    %v1086 = vpack.c.b16 %v722, %v718
    %v1087 = vpack.c.b16 %v723, %v719
    %v1088 = vpack.c.b16 %v728, %v724
    %v1089 = vpack.c.b16 %v729, %v725
    %v1090 = vpack.c.b16 %v730, %v726
    %v1091 = vpack.c.b16 %v731, %v727
    %v1092 = vpack.c.b16 %v736, %v732
    %v1093 = vpack.c.b16 %v737, %v733
    %v1094 = vpack.c.b16 %v738, %v734
    %v1095 = vpack.c.b16 %v739, %v735
    %v1096 = vpack.c.b16 %v744, %v740
    %v1097 = vpack.c.b16 %v745, %v741
    %v1098 = vpack.c.b16 %v746, %v742
    %v1099 = vpack.c.b16 %v747, %v743
    %v1100 = vpack.c.b16 %v752, %v748
    %v1101 = vpack.c.b16 %v753, %v749
    %v1102 = vpack.c.b16 %v754, %v750
    %v1103 = vpack.c.b16 %v755, %v751
    %v1104 = vpack.c.b16 %v760, %v756
    %v1105 = vpack.c.b16 %v761, %v757
    %v1106 = vpack.c.b16 %v762, %v758
    %v1107 = vpack.c.b16 %v763, %v759
    %v1108 = vpack.c.b16 %v768, %v764
    %v1109 = vpack.c.b16 %v769, %v765
    %v1110 = vpack.c.b16 %v770, %v766
    %v1111 = vpack.c.b16 %v771, %v767
    %v1112 = vpack.c.b16 %v776, %v772
    %v1113 = vpack.c.b16 %v777, %v773
    %v1114 = vpack.c.b16 %v778, %v774
    %v1115 = vpack.c.b16 %v779, %v775
    %v1116 = vpack.c.b16 %v784, %v780
    %v1117 = vpack.c.b16 %v785, %v781
    %v1118 = vpack.c.b16 %v786, %v782
    %v1119 = vpack.c.b16 %v787, %v783
    %v1120 = vpack.c.b16 %v792, %v788
    %v1121 = vpack.c.b16 %v793, %v789
    %v1122 = vpack.c.b16 %v794, %v790
    %v1123 = vpack.c.b16 %v795, %v791
    %v1124 = vpack.c.b16 %v800, %v796
    %v1125 = vpack.c.b16 %v801, %v797
    %v1126 = vpack.c.b16 %v802, %v798
    %v1127 = vpack.c.b16 %v803, %v799
    %v1128 = vpack.c.b16 %v808, %v804
    %v1129 = vpack.c.b16 %v809, %v805
    %v1130 = vpack.c.b16 %v810, %v806
    %v1131 = vpack.c.b16 %v811, %v807
    %v1132 = vpack.c.b16 %v816, %v812
    %v1133 = vpack.c.b16 %v817, %v813
    %v1134 = vpack.c.b16 %v818, %v814
    %v1135 = vpack.c.b16 %v819, %v815
    %v1136 = vpack.c.b16 %v824, %v820
    %v1137 = vpack.c.b16 %v825, %v821
    %v1138 = vpack.c.b16 %v826, %v822
    %v1139 = vpack.c.b16 %v827, %v823
    %v1140 = vpack.c.b16 %v832, %v828
    %v1141 = vpack.c.b16 %v833, %v829
    %v1142 = vpack.c.b16 %v834, %v830
    %v1143 = vpack.c.b16 %v835, %v831
    %v1144 = vpack.c.b16 %v840, %v836
    %v1145 = vpack.c.b16 %v841, %v837
    %v1146 = vpack.c.b16 %v842, %v838
    %v1147 = vpack.c.b16 %v843, %v839
    %v1148 = vpack.c.b16 %v848, %v844
    %v1149 = vpack.c.b16 %v849, %v845
    %v1150 = vpack.c.b16 %v850, %v846
    %v1151 = vpack.c.b16 %v851, %v847
    %v1152 = vpack.c.b16 %v856, %v852
    %v1153 = vpack.c.b16 %v857, %v853
    %v1154 = vpack.c.b16 %v858, %v854
    %v1155 = vpack.c.b16 %v859, %v855
    %v1156 = vpack.c.b16 %v864, %v860
    %v1157 = vpack.c.b16 %v865, %v861
    %v1158 = vpack.c.b16 %v866, %v862
    %v1159 = vpack.c.b16 %v867, %v863
    %v1160 = vpack.c.b16 %v872, %v868
    %v1161 = vpack.c.b16 %v873, %v869
    %v1162 = vpack.c.b16 %v874, %v870
    %v1163 = vpack.c.b16 %v875, %v871
    %v1164 = vpack.c.b16 %v880, %v876
    %v1165 = vpack.c.b16 %v881, %v877
    %v1166 = vpack.c.b16 %v882, %v878
    %v1167 = vpack.c.b16 %v883, %v879
    %v1168 = vpack.c.b16 %v888, %v884
    %v1169 = vpack.c.b16 %v889, %v885
    %v1170 = vpack.c.b16 %v890, %v886
    %v1171 = vpack.c.b16 %v891, %v887
    %v1172 = vpack.c.b16 %v896, %v892
    %v1173 = vpack.c.b16 %v897, %v893
    %v1174 = vpack.c.b16 %v898, %v894
    %v1175 = vpack.c.b16 %v899, %v895
    %v1176 = vpack.c.b16 %v904, %v900
    %v1177 = vpack.c.b16 %v905, %v901
    %v1178 = vpack.c.b16 %v906, %v902
    %v1179 = vpack.c.b16 %v907, %v903
    %v1180 = vpack.c.b16 %v912, %v908
    %v1181 = vpack.c.b16 %v913, %v909
    %v1182 = vpack.c.b16 %v914, %v910
    %v1183 = vpack.c.b16 %v915, %v911
    %v1184 = vpack.c.b16 %v920, %v916
    %v1185 = vpack.c.b16 %v921, %v917
    %v1186 = vpack.c.b16 %v922, %v918
    %v1187 = vpack.c.b16 %v923, %v919
    %v1188 = vpack.c.b16 %v928, %v924
    %v1189 = vpack.c.b16 %v929, %v925
    %v1190 = vpack.c.b16 %v930, %v926
    %v1191 = vpack.c.b16 %v931, %v927
    %v1192 = vpack.c.b16 %v936, %v932
    %v1193 = vpack.c.b16 %v937, %v933
    %v1194 = vpack.c.b16 %v938, %v934
    %v1195 = vpack.c.b16 %v939, %v935
    %v1196 = vpack.c.b16 %v944, %v940
    %v1197 = vpack.c.b16 %v945, %v941
    %v1198 = vpack.c.b16 %v946, %v942
    %v1199 = vpack.c.b16 %v947, %v943
    %v1200 = vpack.c.b16 %v952, %v948
    %v1201 = vpack.c.b16 %v953, %v949
    %v1202 = vpack.c.b16 %v954, %v950
    %v1203 = vpack.c.b16 %v955, %v951
    %v1204 = vpack.c.b16 %v960, %v956
    %v1205 = vpack.c.b16 %v961, %v957
    %v1206 = vpack.c.b16 %v962, %v958
    %v1207 = vpack.c.b16 %v963, %v959
    %v1208 = vpack.c.b16 %v968, %v964
    %v1209 = vpack.c.b16 %v969, %v965
    %v1210 = vpack.c.b16 %v970, %v966
    %v1211 = vpack.c.b16 %v971, %v967
    %v1212 = vpack.c.b16 %v976, %v972
    %v1213 = vpack.c.b16 %v977, %v973
    %v1214 = vpack.c.b16 %v978, %v974
    %v1215 = vpack.c.b16 %v979, %v975
    %v1216 = vpack.c.b16 %v984, %v980
    %v1217 = vpack.c.b16 %v985, %v981
    %v1218 = vpack.c.b16 %v986, %v982
    %v1219 = vpack.c.b16 %v987, %v983
    %v1220 = vpack.c.b16 %v992, %v988
    %v1221 = vpack.c.b16 %v993, %v989
    %v1222 = vpack.c.b16 %v994, %v990
    %v1223 = vpack.c.b16 %v995, %v991
    %v1224 = vpack.c.b16 %v1000, %v996
    %v1225 = vpack.c.b16 %v1001, %v997
    %v1226 = vpack.c.b16 %v1002, %v998
    %v1227 = vpack.c.b16 %v1003, %v999
    %v1228 = vpack.c.b16 %v1008, %v1004
    %v1229 = vpack.c.b16 %v1009, %v1005
    %v1230 = vpack.c.b16 %v1010, %v1006
    %v1231 = vpack.c.b16 %v1011, %v1007
    %v1232 = vpack.c.b16 %v1016, %v1012
    %v1233 = vpack.c.b16 %v1017, %v1013
    %v1234 = vpack.c.b16 %v1018, %v1014
    %v1235 = vpack.c.b16 %v1019, %v1015
    %v1236 = vpack.c.b16 %v1024, %v1020
    %v1237 = vpack.c.b16 %v1025, %v1021
    %v1238 = vpack.c.b16 %v1026, %v1022
    %v1239 = vpack.c.b16 %v1027, %v1023
    %v1240 = vpack.c.b16 %v1032, %v1028
    %v1241 = vpack.c.b16 %v1033, %v1029
    %v1242 = vpack.c.b16 %v1034, %v1030
    %v1243 = vpack.c.b16 %v1035, %v1031
    %v1244 = vpack.c.b16 %v1040, %v1036
    %v1245 = vpack.c.b16 %v1041, %v1037
    %v1246 = vpack.c.b16 %v1042, %v1038
    %v1247 = vpack.c.b16 %v1043, %v1039
    %v1248 = vpack.c.b16 %v1048, %v1044
    %v1249 = vpack.c.b16 %v1049, %v1045
    %v1250 = vpack.c.b16 %v1050, %v1046
    %v1251 = vpack.c.b16 %v1051, %v1047
    %v1252 = vpack.c.b16 %v1056, %v1052
    %v1253 = vpack.c.b16 %v1057, %v1053
    %v1254 = vpack.c.b16 %v1058, %v1054
    %v1255 = vpack.c.b16 %v1059, %v1055
    %v1256 = vpack.c.b16 %v1064, %v1060
    %v1257 = vpack.c.b16 %v1065, %v1061
    %v1258 = vpack.c.b16 %v1066, %v1062
    %v1259 = vpack.c.b16 %v1067, %v1063
    %1452 = vmatprep.subr.bf16.mxu0 %v1069
    %1453 = vmatpush1.bf16.msra.mxu0 %v1068
    %1454 = vmatprep.subr.bf16.mxu0 %v1073
    %1455 = vmatpush1.bf16.msra.mxu0 %v1072
    %1456 = vmatprep.subr.bf16.mxu0 %v1077
    %1457 = vmatpush1.bf16.msra.mxu0 %v1076
    %1458 = vmatprep.subr.bf16.mxu0 %v1081
    %1459 = vmatpush1.bf16.msra.mxu0 %v1080
    %1460 = vmatprep.subr.bf16.mxu0 %v1085
    %1461 = vmatpush1.bf16.msra.mxu0 %v1084
    %1462 = vmatprep.subr.bf16.mxu0 %v1089
    %1463 = vmatpush1.bf16.msra.mxu0 %v1088
    %1464 = vmatprep.subr.bf16.mxu0 %v1093
    %1465 = vmatpush1.bf16.msra.mxu0 %v1092
    %1466 = vmatprep.subr.bf16.mxu0 %v1097
    %1467 = vmatpush1.bf16.msra.mxu0 %v1096
    %1468 = vmatprep.subr.bf16.mxu0 %v1101
    %1469 = vmatpush1.bf16.msra.mxu0 %v1100
    %1470 = vmatprep.subr.bf16.mxu0 %v1105
    %1471 = vmatpush1.bf16.msra.mxu0 %v1104
    %1472 = vmatprep.subr.bf16.mxu0 %v1109
    %1473 = vmatpush1.bf16.msra.mxu0 %v1108
    %1474 = vmatprep.subr.bf16.mxu0 %v1113
    %1475 = vmatpush1.bf16.msra.mxu0 %v1112
    %1476 = vmatprep.subr.bf16.mxu0 %v1117
    %1477 = vmatpush1.bf16.msra.mxu0 %v1116
    %1478 = vmatprep.subr.bf16.mxu0 %v1121
    %1479 = vmatpush1.bf16.msra.mxu0 %v1120
    %1480 = vmatprep.subr.bf16.mxu0 %v1125
    %1481 = vmatpush1.bf16.msra.mxu0 %v1124
    %1482 = vmatprep.subr.bf16.mxu0 %v1129
    %1483 = vmatpush1.bf16.msra.mxu0 %v1128
    %1484 = vmatprep.mubr.bf16.mxu0 %v99
    %1485 = vmatmul.mubr.bf16.gmra.mrb[0].mxu0 %v98
    %v1486 = vpop.f32.mrb[0].mxu0
    %v1487 = vadd.f32 %v445, %v1486
    %v1488 = vpop.f32.mrb[0].mxu0
    %v1489 = vadd.f32 %v447, %v1488
    %v1490 = vpop.f32.mrb[0].mxu0
    %v1491 = vpop.f32.mrb[0].mxu0
    %1492 = vdwg.mxu0
    %1493 = vmatprep.subr.bf16.mxu0 %v1133
    %1494 = vmatpush1.bf16.msra.mxu0 %v1132
    %1495 = vmatprep.subr.bf16.mxu0 %v1137
    %1496 = vmatpush1.bf16.msra.mxu0 %v1136
    %1497 = vmatprep.subr.bf16.mxu0 %v1141
    %1498 = vmatpush1.bf16.msra.mxu0 %v1140
    %1499 = vmatprep.subr.bf16.mxu0 %v1145
    %1500 = vmatpush1.bf16.msra.mxu0 %v1144
    %1501 = vmatprep.subr.bf16.mxu0 %v1149
    %1502 = vmatpush1.bf16.msra.mxu0 %v1148
    %1503 = vmatprep.subr.bf16.mxu0 %v1153
    %1504 = vmatpush1.bf16.msra.mxu0 %v1152
    %1505 = vmatprep.subr.bf16.mxu0 %v1157
    %1506 = vmatpush1.bf16.msra.mxu0 %v1156
    %1507 = vmatprep.subr.bf16.mxu0 %v1161
    %1508 = vmatpush1.bf16.msra.mxu0 %v1160
    %1509 = vmatprep.subr.bf16.mxu0 %v1165
    %1510 = vmatpush1.bf16.msra.mxu0 %v1164
    %1511 = vmatprep.subr.bf16.mxu0 %v1169
    %1512 = vmatpush1.bf16.msra.mxu0 %v1168
    %1513 = vmatprep.subr.bf16.mxu0 %v1173
    %1514 = vmatpush1.bf16.msra.mxu0 %v1172
    %1515 = vmatprep.subr.bf16.mxu0 %v1177
    %1516 = vmatpush1.bf16.msra.mxu0 %v1176
    %1517 = vmatprep.subr.bf16.mxu0 %v1181
    %1518 = vmatpush1.bf16.msra.mxu0 %v1180
    %1519 = vmatprep.subr.bf16.mxu0 %v1185
    %1520 = vmatpush1.bf16.msra.mxu0 %v1184
    %1521 = vmatprep.subr.bf16.mxu0 %v1189
    %1522 = vmatpush1.bf16.msra.mxu0 %v1188
    %1523 = vmatprep.subr.bf16.mxu0 %v1193
    %1524 = vmatpush1.bf16.msra.mxu0 %v1192
    %1525 = vmatprep.mubr.bf16.mxu0 %v101
    %1526 = vmatmul.mubr.bf16.gmra.mrb[0].mxu0 %v100
    %v1527 = vpop.f32.mrb[0].mxu0
    %v1528 = vadd.f32 %v1487, %v1527
    %v1529 = vpop.f32.mrb[0].mxu0
    %v1530 = vadd.f32 %v1489, %v1529
    %v1531 = vpop.f32.mrb[0].mxu0
    %v1532 = vpop.f32.mrb[0].mxu0
    %1533 = vdwg.mxu0
    %1534 = vmatprep.subr.bf16.mxu0 %v1197
    %1535 = vmatpush1.bf16.msra.mxu0 %v1196
    %1536 = vmatprep.subr.bf16.mxu0 %v1201
    %1537 = vmatpush1.bf16.msra.mxu0 %v1200
    %1538 = vmatprep.subr.bf16.mxu0 %v1205
    %1539 = vmatpush1.bf16.msra.mxu0 %v1204
    %1540 = vmatprep.subr.bf16.mxu0 %v1209
    %1541 = vmatpush1.bf16.msra.mxu0 %v1208
    %1542 = vmatprep.subr.bf16.mxu0 %v1213
    %1543 = vmatpush1.bf16.msra.mxu0 %v1212
    %1544 = vmatprep.subr.bf16.mxu0 %v1217
    %1545 = vmatpush1.bf16.msra.mxu0 %v1216
    %1546 = vmatprep.subr.bf16.mxu0 %v1221
    %1547 = vmatpush1.bf16.msra.mxu0 %v1220
    %1548 = vmatprep.subr.bf16.mxu0 %v1225
    %1549 = vmatpush1.bf16.msra.mxu0 %v1224
    %1550 = vmatprep.subr.bf16.mxu0 %v1229
    %1551 = vmatpush1.bf16.msra.mxu0 %v1228
    %1552 = vmatprep.subr.bf16.mxu0 %v1233
    %1553 = vmatpush1.bf16.msra.mxu0 %v1232
    %1554 = vmatprep.subr.bf16.mxu0 %v1237
    %1555 = vmatpush1.bf16.msra.mxu0 %v1236
    %1556 = vmatprep.subr.bf16.mxu0 %v1241
    %1557 = vmatpush1.bf16.msra.mxu0 %v1240
    %1558 = vmatprep.subr.bf16.mxu0 %v1245
    %1559 = vmatpush1.bf16.msra.mxu0 %v1244
    %1560 = vmatprep.subr.bf16.mxu0 %v1249
    %1561 = vmatpush1.bf16.msra.mxu0 %v1248
    %1562 = vmatprep.subr.bf16.mxu0 %v1253
    %1563 = vmatpush1.bf16.msra.mxu0 %v1252
    %1564 = vmatprep.subr.bf16.mxu0 %v1257
    %1565 = vmatpush1.bf16.msra.mxu0 %v1256
    %1566 = vmatprep.mubr.bf16.mxu0 %v103
    %1567 = vmatmul.mubr.bf16.gmra.mrb[0].mxu0 %v102
    %v1568 = vpop.f32.mrb[0].mxu0
    %v1569 = vadd.f32 %v1528, %v1568
    %v1570 = vpop.f32.mrb[0].mxu0
    %v1571 = vadd.f32 %v1530, %v1570
    %v1572 = vpop.f32.mrb[0].mxu0
    %v1573 = vpop.f32.mrb[0].mxu0
    %1574 = vdwg.mxu0
    %1575 = vmatprep.subr.bf16.mxu0 %v1071
    %1576 = vmatpush1.bf16.msra.mxu0 %v1070
    %1577 = vmatprep.subr.bf16.mxu0 %v1075
    %1578 = vmatpush1.bf16.msra.mxu0 %v1074
    %1579 = vmatprep.subr.bf16.mxu0 %v1079
    %1580 = vmatpush1.bf16.msra.mxu0 %v1078
    %1581 = vmatprep.subr.bf16.mxu0 %v1083
    %1582 = vmatpush1.bf16.msra.mxu0 %v1082
    %1583 = vmatprep.subr.bf16.mxu0 %v1087
    %1584 = vmatpush1.bf16.msra.mxu0 %v1086
    %1585 = vmatprep.subr.bf16.mxu0 %v1091
    %1586 = vmatpush1.bf16.msra.mxu0 %v1090
    %1587 = vmatprep.subr.bf16.mxu0 %v1095
    %1588 = vmatpush1.bf16.msra.mxu0 %v1094
    %1589 = vmatprep.subr.bf16.mxu0 %v1099
    %1590 = vmatpush1.bf16.msra.mxu0 %v1098
    %1591 = vmatprep.subr.bf16.mxu0 %v1103
    %1592 = vmatpush1.bf16.msra.mxu0 %v1102
    %1593 = vmatprep.subr.bf16.mxu0 %v1107
    %1594 = vmatpush1.bf16.msra.mxu0 %v1106
    %1595 = vmatprep.subr.bf16.mxu0 %v1111
    %1596 = vmatpush1.bf16.msra.mxu0 %v1110
    %1597 = vmatprep.subr.bf16.mxu0 %v1115
    %1598 = vmatpush1.bf16.msra.mxu0 %v1114
    %1599 = vmatprep.subr.bf16.mxu0 %v1119
    %1600 = vmatpush1.bf16.msra.mxu0 %v1118
    %1601 = vmatprep.subr.bf16.mxu0 %v1123
    %1602 = vmatpush1.bf16.msra.mxu0 %v1122
    %1603 = vmatprep.subr.bf16.mxu0 %v1127
    %1604 = vmatpush1.bf16.msra.mxu0 %v1126
    %1605 = vmatprep.subr.bf16.mxu0 %v1131
    %1606 = vmatpush1.bf16.msra.mxu0 %v1130
    %1607 = vmatprep.mubr.bf16.mxu0 %v99
    %1608 = vmatmul.mubr.bf16.gmra.mrb[0].mxu0 %v98
    %v1609 = vpop.f32.mrb[0].mxu0
    %v1610 = vadd.f32 %v486, %v1609
    %v1611 = vpop.f32.mrb[0].mxu0
    %v1612 = vadd.f32 %v488, %v1611
    %v1613 = vpop.f32.mrb[0].mxu0
    %v1614 = vpop.f32.mrb[0].mxu0
    %1615 = vdwg.mxu0
    %1616 = vmatprep.subr.bf16.mxu0 %v1135
    %1617 = vmatpush1.bf16.msra.mxu0 %v1134
    %1618 = vmatprep.subr.bf16.mxu0 %v1139
    %1619 = vmatpush1.bf16.msra.mxu0 %v1138
    %1620 = vmatprep.subr.bf16.mxu0 %v1143
    %1621 = vmatpush1.bf16.msra.mxu0 %v1142
    %1622 = vmatprep.subr.bf16.mxu0 %v1147
    %1623 = vmatpush1.bf16.msra.mxu0 %v1146
    %1624 = vmatprep.subr.bf16.mxu0 %v1151
    %1625 = vmatpush1.bf16.msra.mxu0 %v1150
    %1626 = vmatprep.subr.bf16.mxu0 %v1155
    %1627 = vmatpush1.bf16.msra.mxu0 %v1154
    %1628 = vmatprep.subr.bf16.mxu0 %v1159
    %1629 = vmatpush1.bf16.msra.mxu0 %v1158
    %1630 = vmatprep.subr.bf16.mxu0 %v1163
    %1631 = vmatpush1.bf16.msra.mxu0 %v1162
    %1632 = vmatprep.subr.bf16.mxu0 %v1167
    %1633 = vmatpush1.bf16.msra.mxu0 %v1166
    %1634 = vmatprep.subr.bf16.mxu0 %v1171
    %1635 = vmatpush1.bf16.msra.mxu0 %v1170
    %1636 = vmatprep.subr.bf16.mxu0 %v1175
    %1637 = vmatpush1.bf16.msra.mxu0 %v1174
    %1638 = vmatprep.subr.bf16.mxu0 %v1179
    %1639 = vmatpush1.bf16.msra.mxu0 %v1178
    %1640 = vmatprep.subr.bf16.mxu0 %v1183
    %1641 = vmatpush1.bf16.msra.mxu0 %v1182
    %1642 = vmatprep.subr.bf16.mxu0 %v1187
    %1643 = vmatpush1.bf16.msra.mxu0 %v1186
    %1644 = vmatprep.subr.bf16.mxu0 %v1191
    %1645 = vmatpush1.bf16.msra.mxu0 %v1190
    %1646 = vmatprep.subr.bf16.mxu0 %v1195
    %1647 = vmatpush1.bf16.msra.mxu0 %v1194
    %1648 = vmatprep.mubr.bf16.mxu0 %v101
    %1649 = vmatmul.mubr.bf16.gmra.mrb[0].mxu0 %v100
    %v1650 = vpop.f32.mrb[0].mxu0
    %v1651 = vadd.f32 %v1610, %v1650
    %v1652 = vpop.f32.mrb[0].mxu0
    %v1653 = vadd.f32 %v1612, %v1652
    %v1654 = vpop.f32.mrb[0].mxu0
    %v1655 = vpop.f32.mrb[0].mxu0
    %1656 = vdwg.mxu0
    %1657 = vmatprep.subr.bf16.mxu0 %v1199
    %1658 = vmatpush1.bf16.msra.mxu0 %v1198
    %1659 = vmatprep.subr.bf16.mxu0 %v1203
    %1660 = vmatpush1.bf16.msra.mxu0 %v1202
    %1661 = vmatprep.subr.bf16.mxu0 %v1207
    %1662 = vmatpush1.bf16.msra.mxu0 %v1206
    %1663 = vmatprep.subr.bf16.mxu0 %v1211
    %1664 = vmatpush1.bf16.msra.mxu0 %v1210
    %1665 = vmatprep.subr.bf16.mxu0 %v1215
    %1666 = vmatpush1.bf16.msra.mxu0 %v1214
    %1667 = vmatprep.subr.bf16.mxu0 %v1219
    %1668 = vmatpush1.bf16.msra.mxu0 %v1218
    %1669 = vmatprep.subr.bf16.mxu0 %v1223
    %1670 = vmatpush1.bf16.msra.mxu0 %v1222
    %1671 = vmatprep.subr.bf16.mxu0 %v1227
    %1672 = vmatpush1.bf16.msra.mxu0 %v1226
    %1673 = vmatprep.subr.bf16.mxu0 %v1231
    %1674 = vmatpush1.bf16.msra.mxu0 %v1230
    %1675 = vmatprep.subr.bf16.mxu0 %v1235
    %1676 = vmatpush1.bf16.msra.mxu0 %v1234
    %1677 = vmatprep.subr.bf16.mxu0 %v1239
    %1678 = vmatpush1.bf16.msra.mxu0 %v1238
    %1679 = vmatprep.subr.bf16.mxu0 %v1243
    %1680 = vmatpush1.bf16.msra.mxu0 %v1242
    %1681 = vmatprep.subr.bf16.mxu0 %v1247
    %1682 = vmatpush1.bf16.msra.mxu0 %v1246
    %1683 = vmatprep.subr.bf16.mxu0 %v1251
    %1684 = vmatpush1.bf16.msra.mxu0 %v1250
    %1685 = vmatprep.subr.bf16.mxu0 %v1255
    %1686 = vmatpush1.bf16.msra.mxu0 %v1254
    %1687 = vmatprep.subr.bf16.mxu0 %v1259
    %1688 = vmatpush1.bf16.msra.mxu0 %v1258
    %1689 = vmatprep.mubr.bf16.mxu0 %v103
    %1690 = vmatmul.mubr.bf16.gmra.mrb[0].mxu0 %v102
    %v1691 = vpop.f32.mrb[0].mxu0
    %v1692 = vadd.f32 %v1651, %v1691
    %v1693 = vpop.f32.mrb[0].mxu0
    %v1694 = vadd.f32 %v1653, %v1693
    %v1695 = vpop.f32.mrb[0].mxu0
    %v1696 = vpop.f32.mrb[0].mxu0
    %1697 = vdwg.mxu0
    %v1698 = vld [vmem:[%s4] sm:$0xf]
    %v1700 = vlaneseq
    %v1701 = vshrl.u32 %v1700, 7
    %v1702 = vsub.s32 0, %v1701
    %v1703 = vrot.slane %v1698, %v1702
    %v1704 = vlaneseq
    %v1705 = vshrl.u32 %v1704, 7
    %v1706 = vsub.s32 1, %v1705
    %v1707 = vrot.slane %v1698, %v1706
    %v1708 = vlaneseq
    %v1709 = vshrl.u32 %v1708, 7
    %v1710 = vsub.s32 2, %v1709
    %v1711 = vrot.slane %v1698, %v1710
    %v1712 = vlaneseq
    %v1713 = vshrl.u32 %v1712, 7
    %v1714 = vsub.s32 3, %v1713
    %v1715 = vrot.slane %v1698, %v1714
    %v1720 = vadd.f32 %v1569, %v1703
    %v1721 = vadd.f32 %v1571, %v1707
    %v1722 = vadd.f32 %v1692, %v1711
    %v1723 = vadd.f32 %v1694, %v1715
    %v1728 = vcombine.low %v1720, %v1721
    %v1729 = vcombine.low %v1722, %v1723
    %v1731 = vunpack.c.l.s4 1983009808
    %v1732 = vunpack.c.0.s8 %v1731
    %v1733 = vlaneseq
    %v1734 = vshrl.u32 %v1733, 7
    %v1735 = vsub.s32 %v1732, %v1734
    %v1736 = vrot.slane %v1728, %v1735
    %v1738 = vunpack.c.l.s4 1983009808
    %v1739 = vunpack.c.0.s8 %v1738
    %v1740 = vlaneseq
    %v1741 = vshrl.u32 %v1740, 7
    %v1742 = vsub.s32 %v1739, %v1741
    %v1743 = vrot.slane %v1729, %v1742
    %v1744 = vcombine.low %v1736, %v1743
    %1746 = vst [vmem:[#allocation10] sm:$0xff] %v1744
    // Predicated region
    $region30: #{tpu_custom_call.1} parent=1 // pred_check
      _
    $region31: #{tpu_custom_call.1} parent=1 // pred_check_branch
      %1748 = sbr.rel (0) target = $region33
    $region32: #{tpu_custom_call.1} parent=1 // pred_region
      %s1750 = ssub.s32 128, 128
      %1751 = vsyncadd [#allocation6], %s1750
      %s1753 = sshll.u32 [#allocation10], 4
      %s1754 = int_to_ptr.vmem [resolvable:$true] %s1753
      %1756 = dma.vmem_to_hbm [thread:$0]  %s1754, 128, %s5, [#allocation6]
    $region33: #{tpu_custom_call.1} parent=1 // pred_fallthru
      _
    // Predicated region
    $region34: #{tpu_custom_call.1} parent=1 // pred_check
      _
    $region35: #{tpu_custom_call.1} parent=1 // pred_check_branch
      %1758 = sbr.rel (0) target = $region37
    $region36: #{tpu_custom_call.1} parent=1 // pred_region
      %1759 = dma.done [#allocation6], 128
    $region37: #{tpu_custom_call.1} parent=1 // pred_fallthru
      _
    %1760 = vsyncpa [#allocation5], 1
    %1761 = vsyncpa [#allocation8], 1
    %1762 = vsyncpa [#allocation6], 1

</llo_original>
